<compile_context>
chip_gen: v7x
topology: tpu7x:2x2x1
jax: 0.10.0
libtpu: 0.0.40
codegen_flags: <defaults>
</compile_context>

<pallas_src>
import math

import jax
import jax.numpy as jnp
import numpy as np
from jax.experimental import pallas as pl
from jax.experimental.pallas import tpu as pltpu

L = 128          # max sequence length == lane width
NGRAM = 4        # BLEU uses n = 1..4
PAD_TOKEN = 0    # stands in for options.PAD (deterministic choice)

_CAND_FILL = -1  # sentinel padding (must never be a real token id)
_REF_FILL = -2


def _evaluator_kernel(lens_ref, cand_ref, ref_ref, out_ref):
    """One (predict, target) pair per grid step.

    lens_ref : SMEM (B, 3) int32   -- [len(predict), len(target), PAD token]
    cand_ref : VMEM (1, 1, L) i32  -- predict, padded with _CAND_FILL
    ref_ref  : VMEM (1, 1, L) i32  -- target,  padded with _REF_FILL
    out_ref  : VMEM (1, 1, L) f32  -- lane 0: acc, lane 1: bleu
    """
    f32 = jnp.float32
    b = pl.program_id(0)
    Lc = lens_ref[b, 0]            # len(predict)  (candidate)
    Lt = lens_ref[b, 1]            # len(target)   (reference)
    pad_tok = lens_ref[b, 2]

    c_row = cand_ref[0]            # (1, L): c_row[0, j] = c[j]
    r_row = ref_ref[0]             # (1, L): r_row[0, j] = r[j]

    j_row = jax.lax.broadcasted_iota(jnp.int32, (1, L), 1)   # lane index j
    i_col = jax.lax.broadcasted_iota(jnp.int32, (L, 1), 0)   # sublane index i

    one_i = jnp.ones((1, 1), jnp.int32)
    lc_v = (one_i * Lc).astype(f32)            # (1,1) lengths as tiny vectors
    lt_v = (one_i * Lt).astype(f32)

    # ----------- accuracy: align predict to len(target), then compare -------
    # TODO(synk): Lt == 0 (empty target) divides by zero, same as the reference.
    pad_v = jnp.zeros((1, L), jnp.int32) + pad_tok
    aligned = jnp.where(j_row < Lc, c_row, pad_v)             # pad / truncate
    match = jnp.logical_and(j_row < Lt, aligned == r_row)     # (1, L) bool
    match_sum = jnp.sum(jnp.where(match, 1.0, 0.0), keepdims=True)   # (1, 1)
    acc = match_sum / lt_v * 100.0

    # ----------- BLEU: clipped (modified) n-gram precision, n = 1..4 --------
    # shifted rows built in-kernel (XLU lane rolls): rows[t][0, j] = tok[j + t]
    c_rows = [c_row]
    r_rows = [r_row]
    for t in range(1, NGRAM):
        c_rows.append(pltpu.roll(c_row, L - t, axis=1))
        r_rows.append(pltpu.roll(r_row, L - t, axis=1))

    g_cc = None        # (L, L) bool: cand n-gram @ i == cand n-gram @ j
    g_cr = None        # (L, L) bool: cand n-gram @ i == ref  n-gram @ j
    log_pn_sum = jnp.zeros((1, 1), f32)
    all_valid = jnp.ones((1, 1), f32)

    for t in range(NGRAM):
        n = t + 1
        # column operand col_t[i, j] = c[i + t]: sublane-indexed copy via one
        # in-kernel 128x128 transpose (XLU), no host-side transposed inputs.
        col_t = jnp.transpose(jnp.broadcast_to(c_rows[t], (L, L)))
        eq_cc = col_t == c_rows[t]
        eq_cr = col_t == r_rows[t]
        g_cc = eq_cc if t == 0 else jnp.logical_and(g_cc, eq_cc)
        g_cr = eq_cr if t == 0 else jnp.logical_and(g_cr, eq_cr)

        lim_c = Lc - n + 1          # number of candidate n-grams
        lim_r = Lt - n + 1          # number of reference n-grams

        # per candidate position i: occurrences of its n-gram in cand / ref.
        # boolean matrices + (1,L) vector masks, converted to f32 only here.
        mcc = jnp.where(jnp.logical_and(g_cc, j_row < lim_c), 1.0, 0.0)
        mcr = jnp.where(jnp.logical_and(g_cr, j_row < lim_r), 1.0, 0.0)
        cnt_c = jnp.sum(mcc, axis=1, keepdims=True)           # (L, 1)
        cnt_r = jnp.sum(mcr, axis=1, keepdims=True)           # (L, 1)

        # clipped count: sum_{i < lim_c} min(C_i, R_i) / C_i == sum_g min(c_g, r_g)
        ratio = jnp.minimum(cnt_c, cnt_r) / jnp.maximum(cnt_c, 1.0)
        clipped = jnp.sum(jnp.where(i_col < lim_c, ratio, 0.0),
                          keepdims=True)                       # (1, 1)

        limc_v = one_i * lim_c                                 # (1, 1) i32
        hc_v = jnp.maximum(limc_v, 0).astype(f32)
        valid = jnp.logical_and(clipped > 0.0, limc_v > 0)
        pn = jnp.where(valid, clipped / jnp.maximum(hc_v, 1.0), 1.0)
        log_pn_sum = log_pn_sum + jnp.log(pn)
        all_valid = all_valid * jnp.where(valid, 1.0, 0.0)

    # brevity penalty (reference semantics: r = len(predict), c = len(target))
    bp = jnp.where(lt_v > lc_v, jnp.ones((1, 1), f32),
                   jnp.exp(1.0 - lc_v / lt_v))
    bleu = jnp.where(all_valid > 0.0,
                     bp * jnp.exp(log_pn_sum / float(NGRAM)),
                     jnp.zeros((1, 1), f32)) * 100.0

    # single lane-dense output row per pair: lane 0 = acc, lane 1 = bleu
    out_ref[0] = jnp.where(j_row == 0, acc, jnp.where(j_row == 1, bleu, 0.0))


def _make_pallas_evaluator(batch):
    grid_spec = pltpu.PrefetchScalarGridSpec(
        num_scalar_prefetch=1,                    # lens table -> SMEM
        grid=(batch,),
        in_specs=[
            pl.BlockSpec((1, 1, L), lambda b, lens: (b, 0, 0)),   # predict
            pl.BlockSpec((1, 1, L), lambda b, lens: (b, 0, 0)),   # target
        ],
        out_specs=pl.BlockSpec((1, 1, L), lambda b, lens: (b, 0, 0)),
    )
    return pl.pallas_call(
        _evaluator_kernel,
        out_shape=jax.ShapeDtypeStruct((batch, 1, L), jnp.float32),
        grid_spec=grid_spec,
        compiler_params=pltpu.CompilerParams(
            dimension_semantics=("parallel",)),   # shard batch across TCs (v7x)
    )


@jax.jit
def _evaluator_batch(lens, cand, ref):
    out = _make_pallas_evaluator(cand.shape[0])(lens, cand, ref)
    return out[:, 0, 0], out[:, 0, 1]


def prepare_batch(pairs, pad_token=PAD_TOKEN):
    """Pack (predict, target) token lists into fixed-shape device arrays.

    Shapes depend only on the batch size, never on sentence lengths, so there
    is exactly one compiled kernel per batch size (no per-length retraces).
    """
    bsz = len(pairs)
    cand = np.full((bsz, 1, L), _CAND_FILL, np.int32)
    ref = np.full((bsz, 1, L), _REF_FILL, np.int32)
    lens = np.zeros((bsz, 3), np.int32)
    for i, (p, t) in enumerate(pairs):
        p = np.asarray(p, np.int32).reshape(-1)
        t = np.asarray(t, np.int32).reshape(-1)
        assert p.size <= L and 0 < t.size <= L
        cand[i, 0, :p.size] = p
        ref[i, 0, :t.size] = t
        lens[i] = (p.size, t.size, pad_token)
    return jnp.asarray(lens), jnp.asarray(cand), jnp.asarray(ref)


def evaluator_forward_batch(pairs, pad_token=PAD_TOKEN):
    """Batched Evaluator.forward: ONE pallas_call for all (predict, target)."""
    lens, cand, ref = prepare_batch(pairs, pad_token)
    return _evaluator_batch(lens, cand, ref)


def evaluator_forward(predict, target, pad_token=PAD_TOKEN):
    """Equivalent of Evaluator.forward(predict, target) -> (acc, bleu)."""
    acc, bleu = evaluator_forward_batch([(predict, target)], pad_token)
    return acc[0], bleu[0]


# ----------------------------- pure-Python reference -------------------------
def _ref_forward(predict, target, pad=PAD_TOKEN):
    predict = [int(x) for x in predict]
    target = [int(x) for x in target]
    Lt = len(target)
    if len(predict) < Lt:
        aligned = predict + [pad] * (Lt - len(predict))
    else:
        aligned = predict[:Lt]
    acc = sum(1 for a, b in zip(aligned, target) if a == b) / Lt * 100.0

    def ngram_score(c, r, n):
        d = {}
        for i in range(len(c) - n + 1):
            g = tuple(c[i:i + n])
            d[g] = d.get(g, 0) + 1
        hc = sum(d.values())
        m = 0
        for g, cnt in d.items():
            rc = sum(1 for i in range(len(r) - n + 1) if tuple(r[i:i + n]) == g)
            m += min(rc, cnt)
        if m == 0 or hc == 0:
            return 0.0
        return m / hc

    logs, ok = [], True
    for n in range(1, NGRAM + 1):
        p = ngram_score(predict, target, n)
        if p == 0:
            ok = False
            break
        logs.append(math.log(p))
    bleu = 0.0
    if ok:
        r_len, c_len = len(predict), len(target)
        bp = 1.0 if c_len > r_len else math.exp(1 - r_len / c_len)
        bleu = bp * math.exp(sum(logs) / NGRAM)
    return acc, bleu * 100.0


if __name__ == "__main__":
    key = jax.random.PRNGKey(0)
    target = jax.random.randint(key, (12,), 1, 5, dtype=jnp.int32)
    tgt_list = [int(x) for x in np.asarray(target)]

    # case 1: predict shorter than target (padding path), one token perturbed
    pred1 = list(tgt_list[:10])
    pred1[3] = 4 if pred1[3] != 4 else 3
    # case 2: predict longer than target (truncation + brevity-penalty path)
    pred2 = list(tgt_list) + [1, 2]
    # case 3: heavy n-gram repetition (exercises clipped counts)
    pred3 = [tgt_list[0]] * 4 + list(tgt_list)
    # case 4: zero overlap (BLEU == 0 / invalid-precision path)
    pred4 = [9, 8, 7, 9, 8]

    preds = [pred1, pred2, pred3, pred4]
    pairs = [(p, tgt_list) for p in preds]

    # one pallas_call for the whole batch
    acc_b, bleu_b = evaluator_forward_batch(pairs)
    acc_b = np.asarray(jax.block_until_ready(acc_b))
    bleu_b = np.asarray(jax.block_until_ready(bleu_b))

    for i, p in enumerate(preds):
        ref_acc, ref_bleu = _ref_forward(p, tgt_list)
        assert np.allclose(acc_b[i], ref_acc, rtol=1e-4, atol=1e-3), \
            (i, acc_b[i], ref_acc)
        assert np.allclose(bleu_b[i], ref_bleu, rtol=1e-4, atol=1e-3), \
            (i, bleu_b[i], ref_bleu)

    print("KERNEL_OK")
</pallas_src>

<mosaic_0001>
module attributes {stable_mosaic.version = 11 : i64} {
  func.func @_evaluator_kernel(%arg0: i32, %arg1: memref<4x3xi32, #tpu.memory_space<smem>>, %arg2: memref<1x1x128xi32, #tpu.memory_space<vmem>>, %arg3: memref<1x1x128xi32, #tpu.memory_space<vmem>>, %arg4: memref<1x1x128xf32, #tpu.memory_space<vmem>>) attributes {dimension_semantics = [#tpu.dimension_semantics<parallel>], iteration_bounds = array<i64: 4>, scalar_prefetch = 1 : i64, scratch_operands = 0 : i64, tpu.core_type = #tpu.core_type<tc>, window_params = [{transform_indices = @transform_0, window_bounds = array<i64: 1, 1, 128>}, {transform_indices = @transform_1, window_bounds = array<i64: 1, 1, 128>}, {transform_indices = @transform_2, window_bounds = array<i64: 1, 1, 128>}]} {
    %0 = arith.index_cast %arg0 : i32 to index
    %c0 = arith.constant 0 : index
    %1 = memref.load %arg1[%0, %c0] : memref<4x3xi32, #tpu.memory_space<smem>>
    %2 = arith.index_cast %arg0 : i32 to index
    %c1 = arith.constant 1 : index
    %3 = memref.load %arg1[%2, %c1] : memref<4x3xi32, #tpu.memory_space<smem>>
    %4 = arith.index_cast %arg0 : i32 to index
    %c2 = arith.constant 2 : index
    %5 = memref.load %arg1[%4, %c2] : memref<4x3xi32, #tpu.memory_space<smem>>
    %c0_0 = arith.constant 0 : index
    %c0_1 = arith.constant 0 : index
    %c0_2 = arith.constant 0 : index
    %6 = vector.load %arg2[%c0_0, %c0_1, %c0_2] : memref<1x1x128xi32, #tpu.memory_space<vmem>>, vector<1x1x128xi32>
    %7 = vector.shape_cast %6 : vector<1x1x128xi32> to vector<1x128xi32>
    %c0_3 = arith.constant 0 : index
    %c0_4 = arith.constant 0 : index
    %c0_5 = arith.constant 0 : index
    %8 = vector.load %arg3[%c0_3, %c0_4, %c0_5] : memref<1x1x128xi32, #tpu.memory_space<vmem>>, vector<1x1x128xi32>
    %9 = vector.shape_cast %8 : vector<1x1x128xi32> to vector<1x128xi32>
    %10 = tpu.iota {dimensions = array<i32: 1>} : vector<1x128xi32>
    %11 = tpu.iota {dimensions = array<i32: 0>} : vector<128x1xi32>
    %c1_i32 = arith.constant 1 : i32
    %12 = vector.broadcast %c1_i32 : i32 to vector<1x1xi32>
    %13 = vector.broadcast %1 : i32 to vector<1x1xi32>
    %14 = arith.muli %12, %13 : vector<1x1xi32>
    %15 = arith.sitofp %14 : vector<1x1xi32> to vector<1x1xf32>
    %16 = vector.broadcast %3 : i32 to vector<1x1xi32>
    %17 = arith.muli %12, %16 : vector<1x1xi32>
    %18 = arith.sitofp %17 : vector<1x1xi32> to vector<1x1xf32>
    %c0_i32 = arith.constant 0 : i32
    %19 = vector.broadcast %c0_i32 : i32 to vector<1x128xi32>
    %20 = vector.broadcast %5 : i32 to vector<1x128xi32>
    %21 = arith.addi %19, %20 : vector<1x128xi32>
    %22 = vector.broadcast %1 : i32 to vector<1x128xi32>
    %23 = arith.cmpi slt, %10, %22 : vector<1x128xi32>
    %24 = arith.select %23, %7, %21 : vector<1x128xi1>, vector<1x128xi32>
    %25 = vector.broadcast %3 : i32 to vector<1x128xi32>
    %26 = arith.cmpi slt, %10, %25 : vector<1x128xi32>
    %27 = arith.cmpi eq, %24, %9 : vector<1x128xi32>
    %28 = arith.andi %26, %27 : vector<1x128xi1>
    %cst = arith.constant 1.000000e+00 : f32
    %cst_6 = arith.constant 0.000000e+00 : f32
    %29 = vector.broadcast %cst : f32 to vector<1x128xf32>
    %30 = vector.broadcast %cst_6 : f32 to vector<1x128xf32>
    %31 = arith.select %28, %29, %30 : vector<1x128xi1>, vector<1x128xf32>
    %32 = vector.shape_cast %31 : vector<1x128xf32> to vector<1x1x128xf32>
    %cst_7 = arith.constant dense<0.000000e+00> : vector<1xf32>
    %33 = vector.multi_reduction <add>, %32, %cst_7 [1, 2] : vector<1x1x128xf32> to vector<1xf32>
    %34 = vector.shape_cast %33 : vector<1xf32> to vector<1x1x1xf32>
    %35 = vector.extract %34[0, 0, 0] : f32 from vector<1x1x1xf32>
    %36 = vector.broadcast %35 : f32 to vector<1x1xf32>
    %37 = arith.divf %36, %18 : vector<1x1xf32>
    %cst_8 = arith.constant 1.000000e+02 : f32
    %38 = vector.broadcast %cst_8 : f32 to vector<1x1xf32>
    %39 = arith.mulf %37, %38 : vector<1x1xf32>
    %c127_i32 = arith.constant 127 : i32
    %40 = tpu.dynamic_rotate %7 by %c127_i32 dim 1 : vector<1x128xi32>, i32 -> vector<1x128xi32>
    %c127_i32_9 = arith.constant 127 : i32
    %41 = tpu.dynamic_rotate %9 by %c127_i32_9 dim 1 : vector<1x128xi32>, i32 -> vector<1x128xi32>
    %c126_i32 = arith.constant 126 : i32
    %42 = tpu.dynamic_rotate %7 by %c126_i32 dim 1 : vector<1x128xi32>, i32 -> vector<1x128xi32>
    %c126_i32_10 = arith.constant 126 : i32
    %43 = tpu.dynamic_rotate %9 by %c126_i32_10 dim 1 : vector<1x128xi32>, i32 -> vector<1x128xi32>
    %c125_i32 = arith.constant 125 : i32
    %44 = tpu.dynamic_rotate %7 by %c125_i32 dim 1 : vector<1x128xi32>, i32 -> vector<1x128xi32>
    %c125_i32_11 = arith.constant 125 : i32
    %45 = tpu.dynamic_rotate %9 by %c125_i32_11 dim 1 : vector<1x128xi32>, i32 -> vector<1x128xi32>
    %cst_12 = arith.constant 0.000000e+00 : f32
    %46 = vector.broadcast %cst_12 : f32 to vector<1x1xf32>
    %cst_13 = arith.constant 1.000000e+00 : f32
    %47 = vector.broadcast %cst_13 : f32 to vector<1x1xf32>
    %48 = vector.shape_cast %7 : vector<1x128xi32> to vector<1x128xi32>
    %49 = vector.broadcast %48 : vector<1x128xi32> to vector<128x128xi32>
    %50 = tpu.transpose %49, [1, 0] : vector<128x128xi32> -> vector<128x128xi32>
    %51 = vector.broadcast %7 : vector<1x128xi32> to vector<128x128xi32>
    %52 = arith.cmpi eq, %50, %51 : vector<128x128xi32>
    %53 = vector.broadcast %9 : vector<1x128xi32> to vector<128x128xi32>
    %54 = arith.cmpi eq, %50, %53 : vector<128x128xi32>
    %c1_i32_14 = arith.constant 1 : i32
    %55 = arith.subi %1, %c1_i32_14 : i32
    %c1_i32_15 = arith.constant 1 : i32
    %56 = arith.addi %55, %c1_i32_15 : i32
    %c1_i32_16 = arith.constant 1 : i32
    %57 = arith.subi %3, %c1_i32_16 : i32
    %c1_i32_17 = arith.constant 1 : i32
    %58 = arith.addi %57, %c1_i32_17 : i32
    %59 = vector.broadcast %56 : i32 to vector<1x128xi32>
    %60 = arith.cmpi slt, %10, %59 : vector<1x128xi32>
    %61 = vector.broadcast %60 : vector<1x128xi1> to vector<128x128xi1>
    %62 = arith.andi %52, %61 : vector<128x128xi1>
    %cst_18 = arith.constant 1.000000e+00 : f32
    %cst_19 = arith.constant 0.000000e+00 : f32
    %63 = vector.broadcast %cst_18 : f32 to vector<128x128xf32>
    %64 = vector.broadcast %cst_19 : f32 to vector<128x128xf32>
    %65 = arith.select %62, %63, %64 : vector<128x128xi1>, vector<128x128xf32>
    %66 = vector.broadcast %58 : i32 to vector<1x128xi32>
    %67 = arith.cmpi slt, %10, %66 : vector<1x128xi32>
    %68 = vector.broadcast %67 : vector<1x128xi1> to vector<128x128xi1>
    %69 = arith.andi %54, %68 : vector<128x128xi1>
    %cst_20 = arith.constant 1.000000e+00 : f32
    %cst_21 = arith.constant 0.000000e+00 : f32
    %70 = vector.broadcast %cst_20 : f32 to vector<128x128xf32>
    %71 = vector.broadcast %cst_21 : f32 to vector<128x128xf32>
    %72 = arith.select %69, %70, %71 : vector<128x128xi1>, vector<128x128xf32>
    %cst_22 = arith.constant dense<0.000000e+00> : vector<128xf32>
    %73 = vector.multi_reduction <add>, %65, %cst_22 [1] : vector<128x128xf32> to vector<128xf32>
    %74 = vector.shape_cast %73 : vector<128xf32> to vector<128x1xf32>
    %cst_23 = arith.constant dense<0.000000e+00> : vector<128xf32>
    %75 = vector.multi_reduction <add>, %72, %cst_23 [1] : vector<128x128xf32> to vector<128xf32>
    %76 = vector.shape_cast %75 : vector<128xf32> to vector<128x1xf32>
    %77 = arith.minimumf %74, %76 : vector<128x1xf32>
    %cst_24 = arith.constant 1.000000e+00 : f32
    %78 = vector.broadcast %cst_24 : f32 to vector<128x1xf32>
    %79 = arith.maximumf %74, %78 : vector<128x1xf32>
    %80 = arith.divf %77, %79 : vector<128x1xf32>
    %81 = vector.broadcast %56 : i32 to vector<128x1xi32>
    %82 = arith.cmpi slt, %11, %81 : vector<128x1xi32>
    %cst_25 = arith.constant 0.000000e+00 : f32
    %83 = vector.broadcast %cst_25 : f32 to vector<128x1xf32>
    %84 = arith.select %82, %80, %83 : vector<128x1xi1>, vector<128x1xf32>
    %85 = vector.shape_cast %84 : vector<128x1xf32> to vector<1x128x1xf32>
    %cst_26 = arith.constant dense<0.000000e+00> : vector<1xf32>
    %86 = vector.multi_reduction <add>, %85, %cst_26 [1, 2] : vector<1x128x1xf32> to vector<1xf32>
    %87 = vector.shape_cast %86 : vector<1xf32> to vector<1x1x1xf32>
    %88 = vector.extract %87[0, 0, 0] : f32 from vector<1x1x1xf32>
    %89 = vector.broadcast %88 : f32 to vector<1x1xf32>
    %90 = vector.broadcast %56 : i32 to vector<1x1xi32>
    %91 = arith.muli %12, %90 : vector<1x1xi32>
    %c0_i32_27 = arith.constant 0 : i32
    %92 = vector.broadcast %c0_i32_27 : i32 to vector<1x1xi32>
    %93 = arith.maxsi %91, %92 : vector<1x1xi32>
    %94 = arith.sitofp %93 : vector<1x1xi32> to vector<1x1xf32>
    %cst_28 = arith.constant 0.000000e+00 : f32
    %95 = vector.broadcast %cst_28 : f32 to vector<1x1xf32>
    %96 = arith.cmpf ogt, %89, %95 : vector<1x1xf32>
    %c0_i32_29 = arith.constant 0 : i32
    %97 = vector.broadcast %c0_i32_29 : i32 to vector<1x1xi32>
    %98 = arith.cmpi sgt, %91, %97 : vector<1x1xi32>
    %99 = arith.andi %96, %98 : vector<1x1xi1>
    %cst_30 = arith.constant 1.000000e+00 : f32
    %100 = vector.broadcast %cst_30 : f32 to vector<1x1xf32>
    %101 = arith.maximumf %94, %100 : vector<1x1xf32>
    %102 = arith.divf %89, %101 : vector<1x1xf32>
    %cst_31 = arith.constant 1.000000e+00 : f32
    %103 = vector.broadcast %cst_31 : f32 to vector<1x1xf32>
    %104 = arith.select %99, %102, %103 : vector<1x1xi1>, vector<1x1xf32>
    %105 = math.log %104 : vector<1x1xf32>
    %106 = arith.addf %46, %105 : vector<1x1xf32>
    %cst_32 = arith.constant 1.000000e+00 : f32
    %cst_33 = arith.constant 0.000000e+00 : f32
    %107 = vector.broadcast %cst_32 : f32 to vector<1x1xf32>
    %108 = vector.broadcast %cst_33 : f32 to vector<1x1xf32>
    %109 = arith.select %99, %107, %108 : vector<1x1xi1>, vector<1x1xf32>
    %110 = arith.mulf %47, %109 : vector<1x1xf32>
    %111 = vector.shape_cast %40 : vector<1x128xi32> to vector<1x128xi32>
    %112 = vector.broadcast %111 : vector<1x128xi32> to vector<128x128xi32>
    %113 = tpu.transpose %112, [1, 0] : vector<128x128xi32> -> vector<128x128xi32>
    %114 = vector.broadcast %40 : vector<1x128xi32> to vector<128x128xi32>
    %115 = arith.cmpi eq, %113, %114 : vector<128x128xi32>
    %116 = vector.broadcast %41 : vector<1x128xi32> to vector<128x128xi32>
    %117 = arith.cmpi eq, %113, %116 : vector<128x128xi32>
    %118 = arith.andi %52, %115 : vector<128x128xi1>
    %119 = arith.andi %54, %117 : vector<128x128xi1>
    %c2_i32 = arith.constant 2 : i32
    %120 = arith.subi %1, %c2_i32 : i32
    %c1_i32_34 = arith.constant 1 : i32
    %121 = arith.addi %120, %c1_i32_34 : i32
    %c2_i32_35 = arith.constant 2 : i32
    %122 = arith.subi %3, %c2_i32_35 : i32
    %c1_i32_36 = arith.constant 1 : i32
    %123 = arith.addi %122, %c1_i32_36 : i32
    %124 = vector.broadcast %121 : i32 to vector<1x128xi32>
    %125 = arith.cmpi slt, %10, %124 : vector<1x128xi32>
    %126 = vector.broadcast %125 : vector<1x128xi1> to vector<128x128xi1>
    %127 = arith.andi %118, %126 : vector<128x128xi1>
    %cst_37 = arith.constant 1.000000e+00 : f32
    %cst_38 = arith.constant 0.000000e+00 : f32
    %128 = vector.broadcast %cst_37 : f32 to vector<128x128xf32>
    %129 = vector.broadcast %cst_38 : f32 to vector<128x128xf32>
    %130 = arith.select %127, %128, %129 : vector<128x128xi1>, vector<128x128xf32>
    %131 = vector.broadcast %123 : i32 to vector<1x128xi32>
    %132 = arith.cmpi slt, %10, %131 : vector<1x128xi32>
    %133 = vector.broadcast %132 : vector<1x128xi1> to vector<128x128xi1>
    %134 = arith.andi %119, %133 : vector<128x128xi1>
    %cst_39 = arith.constant 1.000000e+00 : f32
    %cst_40 = arith.constant 0.000000e+00 : f32
    %135 = vector.broadcast %cst_39 : f32 to vector<128x128xf32>
    %136 = vector.broadcast %cst_40 : f32 to vector<128x128xf32>
    %137 = arith.select %134, %135, %136 : vector<128x128xi1>, vector<128x128xf32>
    %cst_41 = arith.constant dense<0.000000e+00> : vector<128xf32>
    %138 = vector.multi_reduction <add>, %130, %cst_41 [1] : vector<128x128xf32> to vector<128xf32>
    %139 = vector.shape_cast %138 : vector<128xf32> to vector<128x1xf32>
    %cst_42 = arith.constant dense<0.000000e+00> : vector<128xf32>
    %140 = vector.multi_reduction <add>, %137, %cst_42 [1] : vector<128x128xf32> to vector<128xf32>
    %141 = vector.shape_cast %140 : vector<128xf32> to vector<128x1xf32>
    %142 = arith.minimumf %139, %141 : vector<128x1xf32>
    %cst_43 = arith.constant 1.000000e+00 : f32
    %143 = vector.broadcast %cst_43 : f32 to vector<128x1xf32>
    %144 = arith.maximumf %139, %143 : vector<128x1xf32>
    %145 = arith.divf %142, %144 : vector<128x1xf32>
    %146 = vector.broadcast %121 : i32 to vector<128x1xi32>
    %147 = arith.cmpi slt, %11, %146 : vector<128x1xi32>
    %cst_44 = arith.constant 0.000000e+00 : f32
    %148 = vector.broadcast %cst_44 : f32 to vector<128x1xf32>
    %149 = arith.select %147, %145, %148 : vector<128x1xi1>, vector<128x1xf32>
    %150 = vector.shape_cast %149 : vector<128x1xf32> to vector<1x128x1xf32>
    %cst_45 = arith.constant dense<0.000000e+00> : vector<1xf32>
    %151 = vector.multi_reduction <add>, %150, %cst_45 [1, 2] : vector<1x128x1xf32> to vector<1xf32>
    %152 = vector.shape_cast %151 : vector<1xf32> to vector<1x1x1xf32>
    %153 = vector.extract %152[0, 0, 0] : f32 from vector<1x1x1xf32>
    %154 = vector.broadcast %153 : f32 to vector<1x1xf32>
    %155 = vector.broadcast %121 : i32 to vector<1x1xi32>
    %156 = arith.muli %12, %155 : vector<1x1xi32>
    %c0_i32_46 = arith.constant 0 : i32
    %157 = vector.broadcast %c0_i32_46 : i32 to vector<1x1xi32>
    %158 = arith.maxsi %156, %157 : vector<1x1xi32>
    %159 = arith.sitofp %158 : vector<1x1xi32> to vector<1x1xf32>
    %cst_47 = arith.constant 0.000000e+00 : f32
    %160 = vector.broadcast %cst_47 : f32 to vector<1x1xf32>
    %161 = arith.cmpf ogt, %154, %160 : vector<1x1xf32>
    %c0_i32_48 = arith.constant 0 : i32
    %162 = vector.broadcast %c0_i32_48 : i32 to vector<1x1xi32>
    %163 = arith.cmpi sgt, %156, %162 : vector<1x1xi32>
    %164 = arith.andi %161, %163 : vector<1x1xi1>
    %cst_49 = arith.constant 1.000000e+00 : f32
    %165 = vector.broadcast %cst_49 : f32 to vector<1x1xf32>
    %166 = arith.maximumf %159, %165 : vector<1x1xf32>
    %167 = arith.divf %154, %166 : vector<1x1xf32>
    %cst_50 = arith.constant 1.000000e+00 : f32
    %168 = vector.broadcast %cst_50 : f32 to vector<1x1xf32>
    %169 = arith.select %164, %167, %168 : vector<1x1xi1>, vector<1x1xf32>
    %170 = math.log %169 : vector<1x1xf32>
    %171 = arith.addf %106, %170 : vector<1x1xf32>
    %cst_51 = arith.constant 1.000000e+00 : f32
    %cst_52 = arith.constant 0.000000e+00 : f32
    %172 = vector.broadcast %cst_51 : f32 to vector<1x1xf32>
    %173 = vector.broadcast %cst_52 : f32 to vector<1x1xf32>
    %174 = arith.select %164, %172, %173 : vector<1x1xi1>, vector<1x1xf32>
    %175 = arith.mulf %110, %174 : vector<1x1xf32>
    %176 = vector.shape_cast %42 : vector<1x128xi32> to vector<1x128xi32>
    %177 = vector.broadcast %176 : vector<1x128xi32> to vector<128x128xi32>
    %178 = tpu.transpose %177, [1, 0] : vector<128x128xi32> -> vector<128x128xi32>
    %179 = vector.broadcast %42 : vector<1x128xi32> to vector<128x128xi32>
    %180 = arith.cmpi eq, %178, %179 : vector<128x128xi32>
    %181 = vector.broadcast %43 : vector<1x128xi32> to vector<128x128xi32>
    %182 = arith.cmpi eq, %178, %181 : vector<128x128xi32>
    %183 = arith.andi %118, %180 : vector<128x128xi1>
    %184 = arith.andi %119, %182 : vector<128x128xi1>
    %c3_i32 = arith.constant 3 : i32
    %185 = arith.subi %1, %c3_i32 : i32
    %c1_i32_53 = arith.constant 1 : i32
    %186 = arith.addi %185, %c1_i32_53 : i32
    %c3_i32_54 = arith.constant 3 : i32
    %187 = arith.subi %3, %c3_i32_54 : i32
    %c1_i32_55 = arith.constant 1 : i32
    %188 = arith.addi %187, %c1_i32_55 : i32
    %189 = vector.broadcast %186 : i32 to vector<1x128xi32>
    %190 = arith.cmpi slt, %10, %189 : vector<1x128xi32>
    %191 = vector.broadcast %190 : vector<1x128xi1> to vector<128x128xi1>
    %192 = arith.andi %183, %191 : vector<128x128xi1>
    %cst_56 = arith.constant 1.000000e+00 : f32
    %cst_57 = arith.constant 0.000000e+00 : f32
    %193 = vector.broadcast %cst_56 : f32 to vector<128x128xf32>
    %194 = vector.broadcast %cst_57 : f32 to vector<128x128xf32>
    %195 = arith.select %192, %193, %194 : vector<128x128xi1>, vector<128x128xf32>
    %196 = vector.broadcast %188 : i32 to vector<1x128xi32>
    %197 = arith.cmpi slt, %10, %196 : vector<1x128xi32>
    %198 = vector.broadcast %197 : vector<1x128xi1> to vector<128x128xi1>
    %199 = arith.andi %184, %198 : vector<128x128xi1>
    %cst_58 = arith.constant 1.000000e+00 : f32
    %cst_59 = arith.constant 0.000000e+00 : f32
    %200 = vector.broadcast %cst_58 : f32 to vector<128x128xf32>
    %201 = vector.broadcast %cst_59 : f32 to vector<128x128xf32>
    %202 = arith.select %199, %200, %201 : vector<128x128xi1>, vector<128x128xf32>
    %cst_60 = arith.constant dense<0.000000e+00> : vector<128xf32>
    %203 = vector.multi_reduction <add>, %195, %cst_60 [1] : vector<128x128xf32> to vector<128xf32>
    %204 = vector.shape_cast %203 : vector<128xf32> to vector<128x1xf32>
    %cst_61 = arith.constant dense<0.000000e+00> : vector<128xf32>
    %205 = vector.multi_reduction <add>, %202, %cst_61 [1] : vector<128x128xf32> to vector<128xf32>
    %206 = vector.shape_cast %205 : vector<128xf32> to vector<128x1xf32>
    %207 = arith.minimumf %204, %206 : vector<128x1xf32>
    %cst_62 = arith.constant 1.000000e+00 : f32
    %208 = vector.broadcast %cst_62 : f32 to vector<128x1xf32>
    %209 = arith.maximumf %204, %208 : vector<128x1xf32>
    %210 = arith.divf %207, %209 : vector<128x1xf32>
    %211 = vector.broadcast %186 : i32 to vector<128x1xi32>
    %212 = arith.cmpi slt, %11, %211 : vector<128x1xi32>
    %cst_63 = arith.constant 0.000000e+00 : f32
    %213 = vector.broadcast %cst_63 : f32 to vector<128x1xf32>
    %214 = arith.select %212, %210, %213 : vector<128x1xi1>, vector<128x1xf32>
    %215 = vector.shape_cast %214 : vector<128x1xf32> to vector<1x128x1xf32>
    %cst_64 = arith.constant dense<0.000000e+00> : vector<1xf32>
    %216 = vector.multi_reduction <add>, %215, %cst_64 [1, 2] : vector<1x128x1xf32> to vector<1xf32>
    %217 = vector.shape_cast %216 : vector<1xf32> to vector<1x1x1xf32>
    %218 = vector.extract %217[0, 0, 0] : f32 from vector<1x1x1xf32>
    %219 = vector.broadcast %218 : f32 to vector<1x1xf32>
    %220 = vector.broadcast %186 : i32 to vector<1x1xi32>
    %221 = arith.muli %12, %220 : vector<1x1xi32>
    %c0_i32_65 = arith.constant 0 : i32
    %222 = vector.broadcast %c0_i32_65 : i32 to vector<1x1xi32>
    %223 = arith.maxsi %221, %222 : vector<1x1xi32>
    %224 = arith.sitofp %223 : vector<1x1xi32> to vector<1x1xf32>
    %cst_66 = arith.constant 0.000000e+00 : f32
    %225 = vector.broadcast %cst_66 : f32 to vector<1x1xf32>
    %226 = arith.cmpf ogt, %219, %225 : vector<1x1xf32>
    %c0_i32_67 = arith.constant 0 : i32
    %227 = vector.broadcast %c0_i32_67 : i32 to vector<1x1xi32>
    %228 = arith.cmpi sgt, %221, %227 : vector<1x1xi32>
    %229 = arith.andi %226, %228 : vector<1x1xi1>
    %cst_68 = arith.constant 1.000000e+00 : f32
    %230 = vector.broadcast %cst_68 : f32 to vector<1x1xf32>
    %231 = arith.maximumf %224, %230 : vector<1x1xf32>
    %232 = arith.divf %219, %231 : vector<1x1xf32>
    %cst_69 = arith.constant 1.000000e+00 : f32
    %233 = vector.broadcast %cst_69 : f32 to vector<1x1xf32>
    %234 = arith.select %229, %232, %233 : vector<1x1xi1>, vector<1x1xf32>
    %235 = math.log %234 : vector<1x1xf32>
    %236 = arith.addf %171, %235 : vector<1x1xf32>
    %cst_70 = arith.constant 1.000000e+00 : f32
    %cst_71 = arith.constant 0.000000e+00 : f32
    %237 = vector.broadcast %cst_70 : f32 to vector<1x1xf32>
    %238 = vector.broadcast %cst_71 : f32 to vector<1x1xf32>
    %239 = arith.select %229, %237, %238 : vector<1x1xi1>, vector<1x1xf32>
    %240 = arith.mulf %175, %239 : vector<1x1xf32>
    %241 = vector.shape_cast %44 : vector<1x128xi32> to vector<1x128xi32>
    %242 = vector.broadcast %241 : vector<1x128xi32> to vector<128x128xi32>
    %243 = tpu.transpose %242, [1, 0] : vector<128x128xi32> -> vector<128x128xi32>
    %244 = vector.broadcast %44 : vector<1x128xi32> to vector<128x128xi32>
    %245 = arith.cmpi eq, %243, %244 : vector<128x128xi32>
    %246 = vector.broadcast %45 : vector<1x128xi32> to vector<128x128xi32>
    %247 = arith.cmpi eq, %243, %246 : vector<128x128xi32>
    %248 = arith.andi %183, %245 : vector<128x128xi1>
    %249 = arith.andi %184, %247 : vector<128x128xi1>
    %c4_i32 = arith.constant 4 : i32
    %250 = arith.subi %1, %c4_i32 : i32
    %c1_i32_72 = arith.constant 1 : i32
    %251 = arith.addi %250, %c1_i32_72 : i32
    %c4_i32_73 = arith.constant 4 : i32
    %252 = arith.subi %3, %c4_i32_73 : i32
    %c1_i32_74 = arith.constant 1 : i32
    %253 = arith.addi %252, %c1_i32_74 : i32
    %254 = vector.broadcast %251 : i32 to vector<1x128xi32>
    %255 = arith.cmpi slt, %10, %254 : vector<1x128xi32>
    %256 = vector.broadcast %255 : vector<1x128xi1> to vector<128x128xi1>
    %257 = arith.andi %248, %256 : vector<128x128xi1>
    %cst_75 = arith.constant 1.000000e+00 : f32
    %cst_76 = arith.constant 0.000000e+00 : f32
    %258 = vector.broadcast %cst_75 : f32 to vector<128x128xf32>
    %259 = vector.broadcast %cst_76 : f32 to vector<128x128xf32>
    %260 = arith.select %257, %258, %259 : vector<128x128xi1>, vector<128x128xf32>
    %261 = vector.broadcast %253 : i32 to vector<1x128xi32>
    %262 = arith.cmpi slt, %10, %261 : vector<1x128xi32>
    %263 = vector.broadcast %262 : vector<1x128xi1> to vector<128x128xi1>
    %264 = arith.andi %249, %263 : vector<128x128xi1>
    %cst_77 = arith.constant 1.000000e+00 : f32
    %cst_78 = arith.constant 0.000000e+00 : f32
    %265 = vector.broadcast %cst_77 : f32 to vector<128x128xf32>
    %266 = vector.broadcast %cst_78 : f32 to vector<128x128xf32>
    %267 = arith.select %264, %265, %266 : vector<128x128xi1>, vector<128x128xf32>
    %cst_79 = arith.constant dense<0.000000e+00> : vector<128xf32>
    %268 = vector.multi_reduction <add>, %260, %cst_79 [1] : vector<128x128xf32> to vector<128xf32>
    %269 = vector.shape_cast %268 : vector<128xf32> to vector<128x1xf32>
    %cst_80 = arith.constant dense<0.000000e+00> : vector<128xf32>
    %270 = vector.multi_reduction <add>, %267, %cst_80 [1] : vector<128x128xf32> to vector<128xf32>
    %271 = vector.shape_cast %270 : vector<128xf32> to vector<128x1xf32>
    %272 = arith.minimumf %269, %271 : vector<128x1xf32>
    %cst_81 = arith.constant 1.000000e+00 : f32
    %273 = vector.broadcast %cst_81 : f32 to vector<128x1xf32>
    %274 = arith.maximumf %269, %273 : vector<128x1xf32>
    %275 = arith.divf %272, %274 : vector<128x1xf32>
    %276 = vector.broadcast %251 : i32 to vector<128x1xi32>
    %277 = arith.cmpi slt, %11, %276 : vector<128x1xi32>
    %cst_82 = arith.constant 0.000000e+00 : f32
    %278 = vector.broadcast %cst_82 : f32 to vector<128x1xf32>
    %279 = arith.select %277, %275, %278 : vector<128x1xi1>, vector<128x1xf32>
    %280 = vector.shape_cast %279 : vector<128x1xf32> to vector<1x128x1xf32>
    %cst_83 = arith.constant dense<0.000000e+00> : vector<1xf32>
    %281 = vector.multi_reduction <add>, %280, %cst_83 [1, 2] : vector<1x128x1xf32> to vector<1xf32>
    %282 = vector.shape_cast %281 : vector<1xf32> to vector<1x1x1xf32>
    %283 = vector.extract %282[0, 0, 0] : f32 from vector<1x1x1xf32>
    %284 = vector.broadcast %283 : f32 to vector<1x1xf32>
    %285 = vector.broadcast %251 : i32 to vector<1x1xi32>
    %286 = arith.muli %12, %285 : vector<1x1xi32>
    %c0_i32_84 = arith.constant 0 : i32
    %287 = vector.broadcast %c0_i32_84 : i32 to vector<1x1xi32>
    %288 = arith.maxsi %286, %287 : vector<1x1xi32>
    %289 = arith.sitofp %288 : vector<1x1xi32> to vector<1x1xf32>
    %cst_85 = arith.constant 0.000000e+00 : f32
    %290 = vector.broadcast %cst_85 : f32 to vector<1x1xf32>
    %291 = arith.cmpf ogt, %284, %290 : vector<1x1xf32>
    %c0_i32_86 = arith.constant 0 : i32
    %292 = vector.broadcast %c0_i32_86 : i32 to vector<1x1xi32>
    %293 = arith.cmpi sgt, %286, %292 : vector<1x1xi32>
    %294 = arith.andi %291, %293 : vector<1x1xi1>
    %cst_87 = arith.constant 1.000000e+00 : f32
    %295 = vector.broadcast %cst_87 : f32 to vector<1x1xf32>
    %296 = arith.maximumf %289, %295 : vector<1x1xf32>
    %297 = arith.divf %284, %296 : vector<1x1xf32>
    %cst_88 = arith.constant 1.000000e+00 : f32
    %298 = vector.broadcast %cst_88 : f32 to vector<1x1xf32>
    %299 = arith.select %294, %297, %298 : vector<1x1xi1>, vector<1x1xf32>
    %300 = math.log %299 : vector<1x1xf32>
    %301 = arith.addf %236, %300 : vector<1x1xf32>
    %cst_89 = arith.constant 1.000000e+00 : f32
    %cst_90 = arith.constant 0.000000e+00 : f32
    %302 = vector.broadcast %cst_89 : f32 to vector<1x1xf32>
    %303 = vector.broadcast %cst_90 : f32 to vector<1x1xf32>
    %304 = arith.select %294, %302, %303 : vector<1x1xi1>, vector<1x1xf32>
    %305 = arith.mulf %240, %304 : vector<1x1xf32>
    %306 = arith.cmpf ogt, %18, %15 : vector<1x1xf32>
    %cst_91 = arith.constant 1.000000e+00 : f32
    %307 = vector.broadcast %cst_91 : f32 to vector<1x1xf32>
    %308 = arith.divf %15, %18 : vector<1x1xf32>
    %cst_92 = arith.constant 1.000000e+00 : f32
    %309 = vector.broadcast %cst_92 : f32 to vector<1x1xf32>
    %310 = arith.subf %309, %308 : vector<1x1xf32>
    %311 = math.exp %310 : vector<1x1xf32>
    %312 = arith.select %306, %307, %311 : vector<1x1xi1>, vector<1x1xf32>
    %cst_93 = arith.constant 0.000000e+00 : f32
    %313 = vector.broadcast %cst_93 : f32 to vector<1x1xf32>
    %314 = arith.cmpf ogt, %305, %313 : vector<1x1xf32>
    %cst_94 = arith.constant 4.000000e+00 : f32
    %315 = vector.broadcast %cst_94 : f32 to vector<1x1xf32>
    %316 = arith.divf %301, %315 : vector<1x1xf32>
    %317 = math.exp %316 : vector<1x1xf32>
    %318 = arith.mulf %312, %317 : vector<1x1xf32>
    %cst_95 = arith.constant 0.000000e+00 : f32
    %319 = vector.broadcast %cst_95 : f32 to vector<1x1xf32>
    %320 = arith.select %314, %318, %319 : vector<1x1xi1>, vector<1x1xf32>
    %cst_96 = arith.constant 1.000000e+02 : f32
    %321 = vector.broadcast %cst_96 : f32 to vector<1x1xf32>
    %322 = arith.mulf %320, %321 : vector<1x1xf32>
    %c0_i32_97 = arith.constant 0 : i32
    %323 = vector.broadcast %c0_i32_97 : i32 to vector<1x128xi32>
    %324 = arith.cmpi eq, %10, %323 : vector<1x128xi32>
    %c1_i32_98 = arith.constant 1 : i32
    %325 = vector.broadcast %c1_i32_98 : i32 to vector<1x128xi32>
    %326 = arith.cmpi eq, %10, %325 : vector<1x128xi32>
    %cst_99 = arith.constant 0.000000e+00 : f32
    %327 = vector.shape_cast %322 : vector<1x1xf32> to vector<1x1xf32>
    %328 = vector.broadcast %327 : vector<1x1xf32> to vector<1x128xf32>
    %329 = vector.broadcast %cst_99 : f32 to vector<1x128xf32>
    %330 = arith.select %326, %328, %329 : vector<1x128xi1>, vector<1x128xf32>
    %331 = vector.shape_cast %39 : vector<1x1xf32> to vector<1x1xf32>
    %332 = vector.broadcast %331 : vector<1x1xf32> to vector<1x128xf32>
    %333 = arith.select %324, %332, %330 : vector<1x128xi1>, vector<1x128xf32>
    %c0_100 = arith.constant 0 : index
    %c0_101 = arith.constant 0 : index
    %c0_102 = arith.constant 0 : index
    %334 = vector.load %arg4[%c0_100, %c0_101, %c0_102] : memref<1x1x128xf32, #tpu.memory_space<vmem>>, vector<1x1x128xf32>
    %335 = vector.shape_cast %334 : vector<1x1x128xf32> to vector<1x128xf32>
    %336 = vector.shape_cast %333 : vector<1x128xf32> to vector<1x1x128xf32>
    tpu.vector_store %arg4[%c0_100, %c0_101, %c0_102], %336 {strides = array<i32>} : memref<1x1x128xf32, #tpu.memory_space<vmem>>, vector<1x1x128xf32>,
    return
  }
  func.func @transform_0(%arg0: i32, %arg1: memref<4x3xi32, #tpu.memory_space<smem>>) -> (i32, i32, i32) {
    %c0_i32 = arith.constant 0 : i32
    %c0_i32_0 = arith.constant 0 : i32
    %c0_i32_1 = arith.constant 0 : i32
    return %arg0, %c0_i32, %c0_i32_0 : i32, i32, i32
  }
  func.func @transform_1(%arg0: i32, %arg1: memref<4x3xi32, #tpu.memory_space<smem>>) -> (i32, i32, i32) {
    %c0_i32 = arith.constant 0 : i32
    %c0_i32_0 = arith.constant 0 : i32
    %c0_i32_1 = arith.constant 0 : i32
    return %arg0, %c0_i32, %c0_i32_0 : i32, i32, i32
  }
  func.func @transform_2(%arg0: i32, %arg1: memref<4x3xi32, #tpu.memory_space<smem>>) -> (i32, i32, i32) {
    %c0_i32 = arith.constant 0 : i32
    %c0_i32_0 = arith.constant 0 : i32
    %c0_i32_1 = arith.constant 0 : i32
    return %arg0, %c0_i32, %c0_i32_0 : i32, i32, i32
  }
}

</mosaic_0001>

<llo_original>
// kernel: _evaluator_batch.1
$region0: #{_evaluator_batch.1}
  #allocation0 [shape = 'u32[]', space=smem, size = 0x4, offset = 0x4, fixed_abs, tag = 'smem constant byte address 0x4 - core index']
  #allocation1 [shape = 'u32[144,128]{1,0:T(1,128)}', space=vmem, size = 0x12000, scoped, tag = 'internal scratch']
  #allocation2 [shape = 's32[1]{0}', space=sflag, size = 0x4, scoped, tag = 'scoped memory for _evaluator_batch.1']
  #allocation3 [shape = 'u8[2048]{0}', space=smem, size = 0x800, scoped, tag = 'prefetched SMEM operand 0']
  %s0 = inlined_call_operand.hbm [shape: s32[4,3], index: 0, kind: input, shape index: {}]
  %s1 = inlined_call_operand.hbm [shape: s32[4,1,128], index: 1, kind: input, shape index: {}]
  %s2 = inlined_call_operand.vmem [shape: s32[4,1,128], index: 2, kind: input, shape index: {}]
  %s3 = inlined_call_operand.vmem [shape: f32[4,1,128], index: 3, kind: output, shape index: {}]
  %s4 = sld [smem:[#allocation0]]
  $region45: #{_evaluator_batch.1} parent=0
    _
  %s6 = ssub.s32 1, %s4
  %s7 = scalar_select 0, %s6, %s4
  %9 = dma.hbm_to_smem %s0, 64, [#allocation3], [#allocation2]
  %10 = dma.done [#allocation2], 64
  %11 = sfence
  $region1: #{_evaluator_batch.1} parent=0
    #allocation4 [shape = 'u8[1024]{0}', space=vmem, size = 0x400, scoped, tag = 'input window, operand 1']
    #allocation5 [shape = 's32[2]{0}', space=sflag, size = 0x8, scoped, tag = 'scoped memory for _evaluator_batch.1']
    %12 = vsyncpa [#allocation5], 0
    %s13 = scalar_lea.sflag [#allocation5], 1
    %14 = vsyncpa %s13, 0
    loop: start=0, step=1, limit=6
    $region2: #{_evaluator_batch.1} parent=1 // loop_pre_header
      _
    $region3: #{_evaluator_batch.1} parent=1 // loop_header
      %s16 = sphi 0, %s20
      %p17 = scmp.ge.s32.totalorder %s16, 6
      %s26 = sphi 0, %s28
      %s29 = sphi 0, %s26
      %s30 = sphi 0, %s29
      %s46 = sphi 0, %s30
      %s52 = sphi 0, %s54
      %s55 = sphi 0, %s52
      %s56 = sphi 0, %s55
      %s72 = sphi 0, %s56
      %s78 = sphi 0, %s80
      %s81 = sphi 0, %s78
      %s82 = sphi 0, %s81
      %s98 = sphi 0, %s82
    $region4: #{_evaluator_batch.1} parent=1 // loop_header_branch
      %19 = sbr.rel (%p17) target = $region8
    $region5: #{_evaluator_batch.1} parent=1 // loop_body
      %s21 = ssub.s32 %s16, 1
      %s22 = ssub.s32 %s16, 2
      %s23 = sadd.s32 %s16, 1
      %s24 = ssub.s32 %s16, %s23
      %p25 = scmp.eq.s32.totalorder %s24, 0
      %s27 = sadd.s32 %s26, 1
      %s28 = scalar_select %p25, %s26, %s27
      %p31 = pneg %p25
      %p32 = scmp.eq.s32.totalorder %s16, 3
      %p33 = por %p31, %p32
      %p34 = scmp.ne.s32.totalorder %s26, %s29
      %p35 = scmp.eq.s32.totalorder %s16, 0
      %p36 = por %p34, %p35
      %p37 = scmp.ne.s32.totalorder %s26, %s29
      %p38 = scmp.eq.s32.totalorder %s21, 3
      %p39 = por %p37, %p38
      %p40 = scmp.ne.s32.totalorder %s29, %s30
      %p41 = scmp.eq.s32.totalorder %s21, 0
      %p42 = por %p40, %p41
      %p43 = scmp.ne.s32.totalorder %s29, %s30
      %p44 = scmp.eq.s32.totalorder %s22, 3
      %p45 = por %p43, %p44
      %p47 = scmp.ne.s32.totalorder %s30, %s46
      %p48 = scmp.eq.s32.totalorder %s22, 0
      %p49 = por %p47, %p48
      %s50 = ssub.s32 %s16, %s23
      %p51 = scmp.eq.s32.totalorder %s50, 0
      %s53 = sadd.s32 %s52, 1
      %s54 = scalar_select %p51, %s52, %s53
      %p57 = pneg %p51
      %p58 = scmp.eq.s32.totalorder %s16, 3
      %p59 = por %p57, %p58
      %p60 = scmp.ne.s32.totalorder %s52, %s55
      %p61 = scmp.eq.s32.totalorder %s16, 0
      %p62 = por %p60, %p61
      %p63 = scmp.ne.s32.totalorder %s52, %s55
      %p64 = scmp.eq.s32.totalorder %s21, 3
      %p65 = por %p63, %p64
      %p66 = scmp.ne.s32.totalorder %s55, %s56
      %p67 = scmp.eq.s32.totalorder %s21, 0
      %p68 = por %p66, %p67
      %p69 = scmp.ne.s32.totalorder %s55, %s56
      %p70 = scmp.eq.s32.totalorder %s22, 3
      %p71 = por %p69, %p70
      %p73 = scmp.ne.s32.totalorder %s56, %s72
      %p74 = scmp.eq.s32.totalorder %s22, 0
      %p75 = por %p73, %p74
      %s76 = ssub.s32 %s16, %s23
      %p77 = scmp.eq.s32.totalorder %s76, 0
      %s79 = sadd.s32 %s78, 1
      %s80 = scalar_select %p77, %s78, %s79
      %p83 = pneg %p77
      %p84 = scmp.eq.s32.totalorder %s16, 3
      %p85 = por %p83, %p84
      %p86 = scmp.ne.s32.totalorder %s78, %s81
      %p87 = scmp.eq.s32.totalorder %s16, 0
      %p88 = por %p86, %p87
      %p89 = scmp.ne.s32.totalorder %s78, %s81
      %p90 = scmp.eq.s32.totalorder %s21, 3
      %p91 = por %p89, %p90
      %p92 = scmp.ne.s32.totalorder %s81, %s82
      %p93 = scmp.eq.s32.totalorder %s21, 0
      %p94 = por %p92, %p93
      %p95 = scmp.ne.s32.totalorder %s81, %s82
      %p96 = scmp.eq.s32.totalorder %s22, 3
      %p97 = por %p95, %p96
      %p99 = scmp.ne.s32.totalorder %s82, %s98
      %p100 = scmp.eq.s32.totalorder %s22, 0
      %p101 = por %p99, %p100
      %p102 = scmp.le.s32.totalorder 1, %s16
      %p103 = scmp.lt.s32.totalorder %s16, 5
      %p104 = pnand %p102, %p103
      %p105 = pneg %p104
      // Predicated region
      $region9: #{_evaluator_batch.1} parent=5 // pred_check
        _
      $region10: #{_evaluator_batch.1} parent=5 // pred_check_branch
        %107 = sbr.rel (%p104) target = $region12
      $region11: #{_evaluator_batch.1} parent=5 // pred_region
        %s108 = ssub.s32 %s16, 1
      $region12: #{_evaluator_batch.1} parent=5 // pred_fallthru
        _
      %p109 = scmp.lt.s32.totalorder %s16, 4
      // Predicated region
      $region13: #{_evaluator_batch.1} parent=5 // pred_check
        %p110 = pneg %p109
      $region14: #{_evaluator_batch.1} parent=5 // pred_check_branch
        %112 = sbr.rel (%p110) target = $region16
      $region15: #{_evaluator_batch.1} parent=5 // pred_region
        // Predicated region
        $region17: #{_evaluator_batch.1} parent=15 // pred_check
          %p113 = pneg %p36
        $region18: #{_evaluator_batch.1} parent=15 // pred_check_branch
          %115 = sbr.rel (%p113) target = $region20
        $region19: #{_evaluator_batch.1} parent=15 // pred_region
          %s116 = sand.u32 %s26, 1
          %s117 = scalar_lea.sflag [#allocation5], %s116
          %s118 = sand.u32 %s26, 1
          %s119 = scalar_lea.vmem [#allocation4], %s118
          %s121 = ssub.s32 16, 16
          %122 = vsyncadd %s117, %s121
          %s123 = smul.addr %s16, 16
          %s124 = scalar_lea.hbm %s1, %s123
          %s126 = sshll.u32 %s119, 4
          %s127 = int_to_ptr.vmem [resolvable:$true] %s126
          %129 = dma.hbm_to_vmem [thread:$0]  %s124, 16, %s127, %s117
        $region20: #{_evaluator_batch.1} parent=15 // pred_fallthru
          _
        // Predicated region
        $region21: #{_evaluator_batch.1} parent=15 // pred_check
          %p130 = pneg %p62
        $region22: #{_evaluator_batch.1} parent=15 // pred_check_branch
          %132 = sbr.rel (%p130) target = $region24
        $region23: #{_evaluator_batch.1} parent=15 // pred_region
          %p133 = scmp.lt.s32.totalorder %s16, 3
          %s134 = scalar_select %p133, %s16, 3
          %s135 = scalar_lea.vmem %s2, %s134
        $region24: #{_evaluator_batch.1} parent=15 // pred_fallthru
          _
      $region16: #{_evaluator_batch.1} parent=5 // pred_fallthru
        _
      %p136 = scmp.le.s32.totalorder 1, %s16
      %p137 = scmp.lt.s32.totalorder %s16, 5
      %p138 = pnand %p136, %p137
      %p139 = pneg %p138
      // Predicated region
      $region25: #{_evaluator_batch.1} parent=5 // pred_check
        _
      $region26: #{_evaluator_batch.1} parent=5 // pred_check_branch
        %141 = sbr.rel (%p138) target = $region28
      $region27: #{_evaluator_batch.1} parent=5 // pred_region
        %s142 = ssub.s32 %s16, 1
        %s143 = sand.u32 %s29, 1
        %s144 = scalar_lea.sflag [#allocation5], %s143
        %s145 = sand.u32 %s29, 1
        %s146 = scalar_lea.vmem [#allocation4], %s145
        // Predicated region
        $region29: #{_evaluator_batch.1} parent=27 // pred_check
          %p147 = pneg %p42
        $region30: #{_evaluator_batch.1} parent=27 // pred_check_branch
          %149 = sbr.rel (%p147) target = $region32
        $region31: #{_evaluator_batch.1} parent=27 // pred_region
          %150 = dma.done %s144, 16
        $region32: #{_evaluator_batch.1} parent=27 // pred_fallthru
          _
        %s151 = sand.u32 %s29, 1
        %s152 = scalar_lea.sflag [#allocation5], %s151
        %s153 = sand.u32 %s29, 1
        %s154 = scalar_lea.vmem [#allocation4], %s153
        %p155 = pneg %p42
        %p156 = pneg %p39
        %p157 = scmp.lt.s32.totalorder %s21, 3
        %s158 = scalar_select %p157, %s21, 3
        %s159 = scalar_lea.vmem %s2, %s158
        %p160 = pneg %p68
        %p161 = pneg %p65
        %p162 = pneg %p94
        %p163 = pneg %p91
        %p164 = scmp.lt.s32.totalorder %s21, 3
        %s165 = scalar_select %p164, %s21, 3
        %s166 = scalar_lea.vmem %s3, %s165
        %p167 = scmp.lt.s32.totalorder %s21, 3
        %s168 = scalar_select %p167, %s21, 3
        %s169 = scalar_lea.vmem %s2, %s168
        %p170 = scmp.lt.s32.totalorder %s21, 3
        %s171 = scalar_select %p170, %s21, 3
        %s172 = scalar_lea.vmem %s3, %s171
        %s173 = smul.u32 %s21, 128
        %s174 = sld [smem:[#allocation3 + %s173]]
        %s175 = sadd.s32 %s173, 1
        %s176 = sld [smem:[#allocation3 + %s175]]
        %s177 = sadd.s32 %s173, 2
        %s178 = sld [smem:[#allocation3 + %s177]]
        %v179 = vld [vmem:[%s146] sm:$0x1]
        %v180 = vld [vmem:[%s169] sm:$0x1]
        %v181 = vlaneseq
        %v182 = vand.u32 %v181, 127
        %v183 = vlaneseq
        %v184 = vshrl.u32 %v183, 7
        %v185 = vadd.s32 %v184, 8
        %v186 = vadd.s32 %v184, 16
        %v187 = vadd.s32 %v184, 24
        %v188 = vadd.s32 %v184, 32
        %v189 = vadd.s32 %v184, 40
        %v190 = vadd.s32 %v184, 48
        %v191 = vadd.s32 %v184, 56
        %v192 = vadd.s32 %v184, 64
        %v193 = vadd.s32 %v184, 72
        %v194 = vadd.s32 %v184, 80
        %v195 = vadd.s32 %v184, 88
        %v196 = vadd.s32 %v184, 96
        %v197 = vadd.s32 %v184, 104
        %v198 = vadd.s32 %v184, 112
        %v199 = vadd.s32 %v184, 120
        %v200 = vstv %s174
        %v201 = vcvt.s32.f32 %v200
        %v202 = vstv %s176
        %v203 = vcvt.s32.f32 %v202
        %v204 = vstv %s178
        %vm205 = vcmp.lt.s32.totalorder %v182, %v200
        %v206 = vsel %vm205, %v179, %v204
        %vm207 = vcmp.lt.s32.totalorder %v182, %v202
        %vm208 = vcmp.eq.s32.totalorder %v206, %v180
        %vm209 = vmand %vm207, %vm208
        %v210 = vsel %vm209, 1.0, 0.0
        %vm211 = vcmask 1040384
        %v212 = vsel %vm211, %v210, 0.0
        %213 = vadd.xlane.f32.xlu0 %v212
        %v214 = vpop.xlane.xlu0 %213
        %v215 = vrot.slane %v214, 4
        %v216 = vadd.f32 %v214, %v215
        %v217 = vrot.slane %v216, 2
        %v218 = vadd.f32 %v216, %v217
        %v219 = vrot.slane %v218, 1
        %v220 = vadd.f32 %v218, %v219
        %s221 = vtos %v220
        %v222 = vstv %s221
        %v223 = vrcp.pop %v203
        %v224 = vmul.f32 %v222, %v223
        %v225 = vmul.f32 %v224, 100.0
        %226 = vrot.lane.b32.xlu0 %v179, 127
        %v227 = vpop.permute.xlu0 %226
        %228 = vrot.lane.b32.xlu0 %v180, 127
        %v229 = vpop.permute.xlu0 %228
        %230 = vrot.lane.b32.xlu0 %v179, 126
        %v231 = vpop.permute.xlu0 %230
        %232 = vrot.lane.b32.xlu0 %v180, 126
        %v233 = vpop.permute.xlu0 %232
        %234 = vrot.lane.b32.xlu0 %v179, 125
        %v235 = vpop.permute.xlu0 %234
        %236 = vrot.lane.b32.xlu0 %v180, 125
        %v237 = vpop.permute.xlu0 %236
        %v238 = vlaneseq
        %v239 = vshrl.u32 %v238, 7
        %v240 = vsub.s32 0, %v239
        %v241 = vrot.slane %v179, %v240
        %242 = vxpose.xlu0.b32.start [1/16] %v241, 128
        %243 = vxpose.xlu0.b32.cont [2/16] %v241, 128
        %244 = vxpose.xlu0.b32.cont [3/16] %v241, 128
        %245 = vxpose.xlu0.b32.cont [4/16] %v241, 128
        %246 = vxpose.xlu0.b32.cont [5/16] %v241, 128
        %247 = vxpose.xlu0.b32.cont [6/16] %v241, 128
        %248 = vxpose.xlu0.b32.cont [7/16] %v241, 128
        %249 = vxpose.xlu0.b32.cont [8/16] %v241, 128
        %250 = vxpose.xlu0.b32.cont [9/16] %v241, 128
        %251 = vxpose.xlu0.b32.cont [10/16] %v241, 128
        %252 = vxpose.xlu0.b32.cont [11/16] %v241, 128
        %253 = vxpose.xlu0.b32.cont [12/16] %v241, 128
        %254 = vxpose.xlu0.b32.cont [13/16] %v241, 128
        %255 = vxpose.xlu0.b32.cont [14/16] %v241, 128
        %256 = vxpose.xlu0.b32.cont [15/16] %v241, 128
        %257 = vxpose.xlu0.b32.end [16/16] %v241, 128
        %v258 = vpop.trf.xlu0
        %v259 = vpop.trf.xlu0
        %v260 = vpop.trf.xlu0
        %v261 = vpop.trf.xlu0
        %v262 = vpop.trf.xlu0
        %v263 = vpop.trf.xlu0
        %v264 = vpop.trf.xlu0
        %v265 = vpop.trf.xlu0
        %v266 = vpop.trf.xlu0
        %v267 = vpop.trf.xlu0
        %v268 = vpop.trf.xlu0
        %v269 = vpop.trf.xlu0
        %v270 = vpop.trf.xlu0
        %v271 = vpop.trf.xlu0
        %v272 = vpop.trf.xlu0
        %v273 = vpop.trf.xlu0
        %vm274 = vcmp.eq.s32.totalorder %v258, %v241
        %vm275 = vcmp.eq.s32.totalorder %v259, %v241
        %vm276 = vcmp.eq.s32.totalorder %v260, %v241
        %vm277 = vcmp.eq.s32.totalorder %v261, %v241
        %vm278 = vcmp.eq.s32.totalorder %v262, %v241
        %vm279 = vcmp.eq.s32.totalorder %v263, %v241
        %vm280 = vcmp.eq.s32.totalorder %v264, %v241
        %vm281 = vcmp.eq.s32.totalorder %v265, %v241
        %vm282 = vcmp.eq.s32.totalorder %v266, %v241
        %vm283 = vcmp.eq.s32.totalorder %v267, %v241
        %vm284 = vcmp.eq.s32.totalorder %v268, %v241
        %vm285 = vcmp.eq.s32.totalorder %v269, %v241
        %vm286 = vcmp.eq.s32.totalorder %v270, %v241
        %vm287 = vcmp.eq.s32.totalorder %v271, %v241
        %vm288 = vcmp.eq.s32.totalorder %v272, %v241
        %vm289 = vcmp.eq.s32.totalorder %v273, %v241
        %v290 = vlaneseq
        %v291 = vshrl.u32 %v290, 7
        %v292 = vsub.s32 0, %v291
        %v293 = vrot.slane %v180, %v292
        %vm294 = vcmp.eq.s32.totalorder %v258, %v293
        %vm295 = vcmp.eq.s32.totalorder %v259, %v293
        %vm296 = vcmp.eq.s32.totalorder %v260, %v293
        %vm297 = vcmp.eq.s32.totalorder %v261, %v293
        %vm298 = vcmp.eq.s32.totalorder %v262, %v293
        %vm299 = vcmp.eq.s32.totalorder %v263, %v293
        %vm300 = vcmp.eq.s32.totalorder %v264, %v293
        %vm301 = vcmp.eq.s32.totalorder %v265, %v293
        %vm302 = vcmp.eq.s32.totalorder %v266, %v293
        %vm303 = vcmp.eq.s32.totalorder %v267, %v293
        %vm304 = vcmp.eq.s32.totalorder %v268, %v293
        %vm305 = vcmp.eq.s32.totalorder %v269, %v293
        %vm306 = vcmp.eq.s32.totalorder %v270, %v293
        %vm307 = vcmp.eq.s32.totalorder %v271, %v293
        %vm308 = vcmp.eq.s32.totalorder %v272, %v293
        %vm309 = vcmp.eq.s32.totalorder %v273, %v293
        %v310 = vsel %vm205, 1, 0
        %vm311 = vcmp.eq.s32.totalorder %v310, 1
        %vm312 = vmand %vm274, %vm311
        %vm313 = vmand %vm275, %vm311
        %vm314 = vmand %vm276, %vm311
        %vm315 = vmand %vm277, %vm311
        %vm316 = vmand %vm278, %vm311
        %vm317 = vmand %vm279, %vm311
        %vm318 = vmand %vm280, %vm311
        %vm319 = vmand %vm281, %vm311
        %vm320 = vmand %vm282, %vm311
        %vm321 = vmand %vm283, %vm311
        %vm322 = vmand %vm284, %vm311
        %vm323 = vmand %vm285, %vm311
        %vm324 = vmand %vm286, %vm311
        %vm325 = vmand %vm287, %vm311
        %vm326 = vmand %vm288, %vm311
        %vm327 = vmand %vm289, %vm311
        %v328 = vsel %vm312, 1.0, 0.0
        %v329 = vsel %vm313, 1.0, 0.0
        %v330 = vsel %vm314, 1.0, 0.0
        %v331 = vsel %vm315, 1.0, 0.0
        %v332 = vsel %vm316, 1.0, 0.0
        %v333 = vsel %vm317, 1.0, 0.0
        %v334 = vsel %vm318, 1.0, 0.0
        %v335 = vsel %vm319, 1.0, 0.0
        %v336 = vsel %vm320, 1.0, 0.0
        %v337 = vsel %vm321, 1.0, 0.0
        %v338 = vsel %vm322, 1.0, 0.0
        %v339 = vsel %vm323, 1.0, 0.0
        %v340 = vsel %vm324, 1.0, 0.0
        %v341 = vsel %vm325, 1.0, 0.0
        %v342 = vsel %vm326, 1.0, 0.0
        %v343 = vsel %vm327, 1.0, 0.0
        %v344 = vsel %vm207, 1, 0
        %vm345 = vcmp.eq.s32.totalorder %v344, 1
        %vm346 = vmand %vm294, %vm345
        %vm347 = vmand %vm295, %vm345
        %vm348 = vmand %vm296, %vm345
        %vm349 = vmand %vm297, %vm345
        %vm350 = vmand %vm298, %vm345
        %vm351 = vmand %vm299, %vm345
        %vm352 = vmand %vm300, %vm345
        %vm353 = vmand %vm301, %vm345
        %vm354 = vmand %vm302, %vm345
        %vm355 = vmand %vm303, %vm345
        %vm356 = vmand %vm304, %vm345
        %vm357 = vmand %vm305, %vm345
        %vm358 = vmand %vm306, %vm345
        %vm359 = vmand %vm307, %vm345
        %vm360 = vmand %vm308, %vm345
        %vm361 = vmand %vm309, %vm345
        %v362 = vsel %vm346, 1.0, 0.0
        %v363 = vsel %vm347, 1.0, 0.0
        %v364 = vsel %vm348, 1.0, 0.0
        %v365 = vsel %vm349, 1.0, 0.0
        %v366 = vsel %vm350, 1.0, 0.0
        %v367 = vsel %vm351, 1.0, 0.0
        %v368 = vsel %vm352, 1.0, 0.0
        %v369 = vsel %vm353, 1.0, 0.0
        %v370 = vsel %vm354, 1.0, 0.0
        %v371 = vsel %vm355, 1.0, 0.0
        %v372 = vsel %vm356, 1.0, 0.0
        %v373 = vsel %vm357, 1.0, 0.0
        %v374 = vsel %vm358, 1.0, 0.0
        %v375 = vsel %vm359, 1.0, 0.0
        %v376 = vsel %vm360, 1.0, 0.0
        %v377 = vsel %vm361, 1.0, 0.0
        %378 = vadd.xlane.f32.xlu0 %v328
        %v379 = vpop.xlane.xlu0 %378
        %380 = vadd.xlane.f32.xlu0 %v329
        %v381 = vpop.xlane.xlu0 %380
        %382 = vadd.xlane.f32.xlu0 %v330
        %v383 = vpop.xlane.xlu0 %382
        %384 = vadd.xlane.f32.xlu0 %v331
        %v385 = vpop.xlane.xlu0 %384
        %386 = vadd.xlane.f32.xlu0 %v332
        %v387 = vpop.xlane.xlu0 %386
        %388 = vadd.xlane.f32.xlu0 %v333
        %v389 = vpop.xlane.xlu0 %388
        %390 = vadd.xlane.f32.xlu0 %v334
        %v391 = vpop.xlane.xlu0 %390
        %392 = vadd.xlane.f32.xlu0 %v335
        %v393 = vpop.xlane.xlu0 %392
        %394 = vadd.xlane.f32.xlu0 %v336
        %v395 = vpop.xlane.xlu0 %394
        %396 = vadd.xlane.f32.xlu0 %v337
        %v397 = vpop.xlane.xlu0 %396
        %398 = vadd.xlane.f32.xlu0 %v338
        %v399 = vpop.xlane.xlu0 %398
        %400 = vadd.xlane.f32.xlu0 %v339
        %v401 = vpop.xlane.xlu0 %400
        %402 = vadd.xlane.f32.xlu0 %v340
        %v403 = vpop.xlane.xlu0 %402
        %404 = vadd.xlane.f32.xlu0 %v341
        %v405 = vpop.xlane.xlu0 %404
        %406 = vadd.xlane.f32.xlu0 %v342
        %v407 = vpop.xlane.xlu0 %406
        %408 = vadd.xlane.f32.xlu0 %v343
        %v409 = vpop.xlane.xlu0 %408
        %410 = vadd.xlane.f32.xlu0 %v362
        %v411 = vpop.xlane.xlu0 %410
        %412 = vadd.xlane.f32.xlu0 %v363
        %v413 = vpop.xlane.xlu0 %412
        %414 = vadd.xlane.f32.xlu0 %v364
        %v415 = vpop.xlane.xlu0 %414
        %416 = vadd.xlane.f32.xlu0 %v365
        %v417 = vpop.xlane.xlu0 %416
        %418 = vadd.xlane.f32.xlu0 %v366
        %v419 = vpop.xlane.xlu0 %418
        %420 = vadd.xlane.f32.xlu0 %v367
        %v421 = vpop.xlane.xlu0 %420
        %422 = vadd.xlane.f32.xlu0 %v368
        %v423 = vpop.xlane.xlu0 %422
        %424 = vadd.xlane.f32.xlu0 %v369
        %v425 = vpop.xlane.xlu0 %424
        %426 = vadd.xlane.f32.xlu0 %v370
        %v427 = vpop.xlane.xlu0 %426
        %428 = vadd.xlane.f32.xlu0 %v371
        %v429 = vpop.xlane.xlu0 %428
        %430 = vadd.xlane.f32.xlu0 %v372
        %v431 = vpop.xlane.xlu0 %430
        %432 = vadd.xlane.f32.xlu0 %v373
        %v433 = vpop.xlane.xlu0 %432
        %434 = vadd.xlane.f32.xlu0 %v374
        %v435 = vpop.xlane.xlu0 %434
        %436 = vadd.xlane.f32.xlu0 %v375
        %v437 = vpop.xlane.xlu0 %436
        %438 = vadd.xlane.f32.xlu0 %v376
        %v439 = vpop.xlane.xlu0 %438
        %440 = vadd.xlane.f32.xlu0 %v377
        %v441 = vpop.xlane.xlu0 %440
        %v442 = vmin.f32 %v379, %v411
        %v443 = vmin.f32 %v381, %v413
        %v444 = vmin.f32 %v383, %v415
        %v445 = vmin.f32 %v385, %v417
        %v446 = vmin.f32 %v387, %v419
        %v447 = vmin.f32 %v389, %v421
        %v448 = vmin.f32 %v391, %v423
        %v449 = vmin.f32 %v393, %v425
        %v450 = vmin.f32 %v395, %v427
        %v451 = vmin.f32 %v397, %v429
        %v452 = vmin.f32 %v399, %v431
        %v453 = vmin.f32 %v401, %v433
        %v454 = vmin.f32 %v403, %v435
        %v455 = vmin.f32 %v405, %v437
        %v456 = vmin.f32 %v407, %v439
        %v457 = vmin.f32 %v409, %v441
        %v458 = vmax.f32 %v379, 1.0
        %v459 = vmax.f32 %v381, 1.0
        %v460 = vmax.f32 %v383, 1.0
        %v461 = vmax.f32 %v385, 1.0
        %v462 = vmax.f32 %v387, 1.0
        %v463 = vmax.f32 %v389, 1.0
        %v464 = vmax.f32 %v391, 1.0
        %v465 = vmax.f32 %v393, 1.0
        %v466 = vmax.f32 %v395, 1.0
        %v467 = vmax.f32 %v397, 1.0
        %v468 = vmax.f32 %v399, 1.0
        %v469 = vmax.f32 %v401, 1.0
        %v470 = vmax.f32 %v403, 1.0
        %v471 = vmax.f32 %v405, 1.0
        %v472 = vmax.f32 %v407, 1.0
        %v473 = vmax.f32 %v409, 1.0
        %v474 = vrcp.pop %v458
        %v475 = vmul.f32 %v442, %v474
        %v476 = vrcp.pop %v459
        %v477 = vmul.f32 %v443, %v476
        %v478 = vrcp.pop %v460
        %v479 = vmul.f32 %v444, %v478
        %v480 = vrcp.pop %v461
        %v481 = vmul.f32 %v445, %v480
        %v482 = vrcp.pop %v462
        %v483 = vmul.f32 %v446, %v482
        %v484 = vrcp.pop %v463
        %v485 = vmul.f32 %v447, %v484
        %v486 = vrcp.pop %v464
        %v487 = vmul.f32 %v448, %v486
        %v488 = vrcp.pop %v465
        %v489 = vmul.f32 %v449, %v488
        %v490 = vrcp.pop %v466
        %v491 = vmul.f32 %v450, %v490
        %v492 = vrcp.pop %v467
        %v493 = vmul.f32 %v451, %v492
        %v494 = vrcp.pop %v468
        %v495 = vmul.f32 %v452, %v494
        %v496 = vrcp.pop %v469
        %v497 = vmul.f32 %v453, %v496
        %v498 = vrcp.pop %v470
        %v499 = vmul.f32 %v454, %v498
        %v500 = vrcp.pop %v471
        %v501 = vmul.f32 %v455, %v500
        %v502 = vrcp.pop %v472
        %v503 = vmul.f32 %v456, %v502
        %v504 = vrcp.pop %v473
        %v505 = vmul.f32 %v457, %v504
        %vm506 = vcmp.lt.s32.totalorder %v184, %v200
        %vm507 = vcmp.lt.s32.totalorder %v185, %v200
        %vm508 = vcmp.lt.s32.totalorder %v186, %v200
        %vm509 = vcmp.lt.s32.totalorder %v187, %v200
        %vm510 = vcmp.lt.s32.totalorder %v188, %v200
        %vm511 = vcmp.lt.s32.totalorder %v189, %v200
        %vm512 = vcmp.lt.s32.totalorder %v190, %v200
        %vm513 = vcmp.lt.s32.totalorder %v191, %v200
        %vm514 = vcmp.lt.s32.totalorder %v192, %v200
        %vm515 = vcmp.lt.s32.totalorder %v193, %v200
        %vm516 = vcmp.lt.s32.totalorder %v194, %v200
        %vm517 = vcmp.lt.s32.totalorder %v195, %v200
        %vm518 = vcmp.lt.s32.totalorder %v196, %v200
        %vm519 = vcmp.lt.s32.totalorder %v197, %v200
        %vm520 = vcmp.lt.s32.totalorder %v198, %v200
        %vm521 = vcmp.lt.s32.totalorder %v199, %v200
        %v522 = vsel %vm506, %v475, 0.0
        %v523 = vsel %vm507, %v477, 0.0
        %v524 = vsel %vm508, %v479, 0.0
        %v525 = vsel %vm509, %v481, 0.0
        %v526 = vsel %vm510, %v483, 0.0
        %v527 = vsel %vm511, %v485, 0.0
        %v528 = vsel %vm512, %v487, 0.0
        %v529 = vsel %vm513, %v489, 0.0
        %v530 = vsel %vm514, %v491, 0.0
        %v531 = vsel %vm515, %v493, 0.0
        %v532 = vsel %vm516, %v495, 0.0
        %v533 = vsel %vm517, %v497, 0.0
        %v534 = vsel %vm518, %v499, 0.0
        %v535 = vsel %vm519, %v501, 0.0
        %v536 = vsel %vm520, %v503, 0.0
        %v537 = vsel %vm521, %v505, 0.0
        %vm538 = vcmask 7168
        %v539 = vsel %vm538, %v522, 0.0
        %v540 = vsel %vm538, %v523, 0.0
        %v541 = vadd.f32 %v539, %v540
        %v542 = vsel %vm538, %v524, 0.0
        %v543 = vadd.f32 %v541, %v542
        %v544 = vsel %vm538, %v525, 0.0
        %v545 = vadd.f32 %v543, %v544
        %v546 = vsel %vm538, %v526, 0.0
        %v547 = vadd.f32 %v545, %v546
        %v548 = vsel %vm538, %v527, 0.0
        %v549 = vadd.f32 %v547, %v548
        %v550 = vsel %vm538, %v528, 0.0
        %v551 = vadd.f32 %v549, %v550
        %v552 = vsel %vm538, %v529, 0.0
        %v553 = vadd.f32 %v551, %v552
        %v554 = vsel %vm538, %v530, 0.0
        %v555 = vadd.f32 %v553, %v554
        %v556 = vsel %vm538, %v531, 0.0
        %v557 = vadd.f32 %v555, %v556
        %v558 = vsel %vm538, %v532, 0.0
        %v559 = vadd.f32 %v557, %v558
        %v560 = vsel %vm538, %v533, 0.0
        %v561 = vadd.f32 %v559, %v560
        %v562 = vsel %vm538, %v534, 0.0
        %v563 = vadd.f32 %v561, %v562
        %v564 = vsel %vm538, %v535, 0.0
        %v565 = vadd.f32 %v563, %v564
        %v566 = vsel %vm538, %v536, 0.0
        %v567 = vadd.f32 %v565, %v566
        %v568 = vsel %vm538, %v537, 0.0
        %v569 = vadd.f32 %v567, %v568
        %570 = vadd.xlane.f32.xlu0 %v569
        %v571 = vpop.xlane.xlu0 %570
        %v572 = vrot.slane %v571, 4
        %v573 = vadd.f32 %v571, %v572
        %v574 = vrot.slane %v573, 2
        %v575 = vadd.f32 %v573, %v574
        %v576 = vrot.slane %v575, 1
        %v577 = vadd.f32 %v575, %v576
        %s578 = vtos %v577
        %v579 = vstv %s578
        %vm580 = vcmp.gt.s32.totalorder %v200, 0
        %v581 = vsel %vm580, %v200, 0
        %v582 = vcvt.s32.f32 %v581
        %vm583 = vcmp.gt.f32.partialorder %v579, 0.0
        %vm584 = vcmp.gt.s32.totalorder %v200, 0
        %vm585 = vmand %vm583, %vm584
        %v586 = vmax.f32 %v582, 1.0
        %v587 = vrcp.pop %v586
        %v588 = vmul.f32 %v579, %v587
        %v589 = vsel %vm585, %v588, 1.0
        %v590 = vlog2.pop %v589
        %v591 = vmul.f32 %v590, 0.6931472
        %v592 = vadd.f32 %v591, 0.0
        %v593 = vsel %vm585, 1.0, 0.0
        %v594 = vlaneseq
        %v595 = vshrl.u32 %v594, 7
        %v596 = vsub.s32 0, %v595
        %v597 = vrot.slane %v227, %v596
        %598 = vxpose.xlu0.b32.start [1/16] %v597, 128
        %599 = vxpose.xlu0.b32.cont [2/16] %v597, 128
        %600 = vxpose.xlu0.b32.cont [3/16] %v597, 128
        %601 = vxpose.xlu0.b32.cont [4/16] %v597, 128
        %602 = vxpose.xlu0.b32.cont [5/16] %v597, 128
        %603 = vxpose.xlu0.b32.cont [6/16] %v597, 128
        %604 = vxpose.xlu0.b32.cont [7/16] %v597, 128
        %605 = vxpose.xlu0.b32.cont [8/16] %v597, 128
        %606 = vxpose.xlu0.b32.cont [9/16] %v597, 128
        %607 = vxpose.xlu0.b32.cont [10/16] %v597, 128
        %608 = vxpose.xlu0.b32.cont [11/16] %v597, 128
        %609 = vxpose.xlu0.b32.cont [12/16] %v597, 128
        %610 = vxpose.xlu0.b32.cont [13/16] %v597, 128
        %611 = vxpose.xlu0.b32.cont [14/16] %v597, 128
        %612 = vxpose.xlu0.b32.cont [15/16] %v597, 128
        %613 = vxpose.xlu0.b32.end [16/16] %v597, 128
        %v614 = vpop.trf.xlu0
        %v615 = vpop.trf.xlu0
        %v616 = vpop.trf.xlu0
        %v617 = vpop.trf.xlu0
        %v618 = vpop.trf.xlu0
        %v619 = vpop.trf.xlu0
        %v620 = vpop.trf.xlu0
        %v621 = vpop.trf.xlu0
        %v622 = vpop.trf.xlu0
        %v623 = vpop.trf.xlu0
        %v624 = vpop.trf.xlu0
        %v625 = vpop.trf.xlu0
        %v626 = vpop.trf.xlu0
        %v627 = vpop.trf.xlu0
        %v628 = vpop.trf.xlu0
        %v629 = vpop.trf.xlu0
        %vm630 = vcmp.eq.s32.totalorder %v614, %v597
        %vm631 = vcmp.eq.s32.totalorder %v615, %v597
        %vm632 = vcmp.eq.s32.totalorder %v616, %v597
        %vm633 = vcmp.eq.s32.totalorder %v617, %v597
        %vm634 = vcmp.eq.s32.totalorder %v618, %v597
        %vm635 = vcmp.eq.s32.totalorder %v619, %v597
        %vm636 = vcmp.eq.s32.totalorder %v620, %v597
        %vm637 = vcmp.eq.s32.totalorder %v621, %v597
        %vm638 = vcmp.eq.s32.totalorder %v622, %v597
        %vm639 = vcmp.eq.s32.totalorder %v623, %v597
        %vm640 = vcmp.eq.s32.totalorder %v624, %v597
        %vm641 = vcmp.eq.s32.totalorder %v625, %v597
        %vm642 = vcmp.eq.s32.totalorder %v626, %v597
        %vm643 = vcmp.eq.s32.totalorder %v627, %v597
        %vm644 = vcmp.eq.s32.totalorder %v628, %v597
        %vm645 = vcmp.eq.s32.totalorder %v629, %v597
        %v646 = vlaneseq
        %v647 = vshrl.u32 %v646, 7
        %v648 = vsub.s32 0, %v647
        %v649 = vrot.slane %v229, %v648
        %vm650 = vcmp.eq.s32.totalorder %v614, %v649
        %vm651 = vcmp.eq.s32.totalorder %v615, %v649
        %vm652 = vcmp.eq.s32.totalorder %v616, %v649
        %vm653 = vcmp.eq.s32.totalorder %v617, %v649
        %vm654 = vcmp.eq.s32.totalorder %v618, %v649
        %vm655 = vcmp.eq.s32.totalorder %v619, %v649
        %vm656 = vcmp.eq.s32.totalorder %v620, %v649
        %vm657 = vcmp.eq.s32.totalorder %v621, %v649
        %vm658 = vcmp.eq.s32.totalorder %v622, %v649
        %vm659 = vcmp.eq.s32.totalorder %v623, %v649
        %vm660 = vcmp.eq.s32.totalorder %v624, %v649
        %vm661 = vcmp.eq.s32.totalorder %v625, %v649
        %vm662 = vcmp.eq.s32.totalorder %v626, %v649
        %vm663 = vcmp.eq.s32.totalorder %v627, %v649
        %vm664 = vcmp.eq.s32.totalorder %v628, %v649
        %vm665 = vcmp.eq.s32.totalorder %v629, %v649
        %vm666 = vmand %vm274, %vm630
        %vm667 = vmand %vm275, %vm631
        %vm668 = vmand %vm276, %vm632
        %vm669 = vmand %vm277, %vm633
        %vm670 = vmand %vm278, %vm634
        %vm671 = vmand %vm279, %vm635
        %vm672 = vmand %vm280, %vm636
        %vm673 = vmand %vm281, %vm637
        %vm674 = vmand %vm282, %vm638
        %vm675 = vmand %vm283, %vm639
        %vm676 = vmand %vm284, %vm640
        %vm677 = vmand %vm285, %vm641
        %vm678 = vmand %vm286, %vm642
        %vm679 = vmand %vm287, %vm643
        %vm680 = vmand %vm288, %vm644
        %vm681 = vmand %vm289, %vm645
        %vm682 = vmand %vm294, %vm650
        %vm683 = vmand %vm295, %vm651
        %vm684 = vmand %vm296, %vm652
        %vm685 = vmand %vm297, %vm653
        %vm686 = vmand %vm298, %vm654
        %vm687 = vmand %vm299, %vm655
        %vm688 = vmand %vm300, %vm656
        %vm689 = vmand %vm301, %vm657
        %vm690 = vmand %vm302, %vm658
        %vm691 = vmand %vm303, %vm659
        %vm692 = vmand %vm304, %vm660
        %vm693 = vmand %vm305, %vm661
        %vm694 = vmand %vm306, %vm662
        %vm695 = vmand %vm307, %vm663
        %vm696 = vmand %vm308, %vm664
        %vm697 = vmand %vm309, %vm665
        %s698 = sadd.s32 %s174, 4294967295
        %s699 = sadd.s32 %s176, 4294967295
        %v700 = vstv %s698
        %vm701 = vcmp.lt.s32.totalorder %v182, %v700
        %v702 = vsel %vm701, 1, 0
        %vm703 = vcmp.eq.s32.totalorder %v702, 1
        %vm704 = vmand %vm666, %vm703
        %vm705 = vmand %vm667, %vm703
        %vm706 = vmand %vm668, %vm703
        %vm707 = vmand %vm669, %vm703
        %vm708 = vmand %vm670, %vm703
        %vm709 = vmand %vm671, %vm703
        %vm710 = vmand %vm672, %vm703
        %vm711 = vmand %vm673, %vm703
        %vm712 = vmand %vm674, %vm703
        %vm713 = vmand %vm675, %vm703
        %vm714 = vmand %vm676, %vm703
        %vm715 = vmand %vm677, %vm703
        %vm716 = vmand %vm678, %vm703
        %vm717 = vmand %vm679, %vm703
        %vm718 = vmand %vm680, %vm703
        %vm719 = vmand %vm681, %vm703
        %v720 = vsel %vm704, 1.0, 0.0
        %v721 = vsel %vm705, 1.0, 0.0
        %v722 = vsel %vm706, 1.0, 0.0
        %v723 = vsel %vm707, 1.0, 0.0
        %v724 = vsel %vm708, 1.0, 0.0
        %v725 = vsel %vm709, 1.0, 0.0
        %v726 = vsel %vm710, 1.0, 0.0
        %v727 = vsel %vm711, 1.0, 0.0
        %v728 = vsel %vm712, 1.0, 0.0
        %v729 = vsel %vm713, 1.0, 0.0
        %v730 = vsel %vm714, 1.0, 0.0
        %v731 = vsel %vm715, 1.0, 0.0
        %v732 = vsel %vm716, 1.0, 0.0
        %v733 = vsel %vm717, 1.0, 0.0
        %v734 = vsel %vm718, 1.0, 0.0
        %v735 = vsel %vm719, 1.0, 0.0
        %v736 = vstv %s699
        %vm737 = vcmp.lt.s32.totalorder %v182, %v736
        %v738 = vsel %vm737, 1, 0
        %vm739 = vcmp.eq.s32.totalorder %v738, 1
        %vm740 = vmand %vm682, %vm739
        %vm741 = vmand %vm683, %vm739
        %vm742 = vmand %vm684, %vm739
        %vm743 = vmand %vm685, %vm739
        %vm744 = vmand %vm686, %vm739
        %vm745 = vmand %vm687, %vm739
        %vm746 = vmand %vm688, %vm739
        %vm747 = vmand %vm689, %vm739
        %vm748 = vmand %vm690, %vm739
        %vm749 = vmand %vm691, %vm739
        %vm750 = vmand %vm692, %vm739
        %vm751 = vmand %vm693, %vm739
        %vm752 = vmand %vm694, %vm739
        %vm753 = vmand %vm695, %vm739
        %vm754 = vmand %vm696, %vm739
        %vm755 = vmand %vm697, %vm739
        %v756 = vsel %vm740, 1.0, 0.0
        %v757 = vsel %vm741, 1.0, 0.0
        %v758 = vsel %vm742, 1.0, 0.0
        %v759 = vsel %vm743, 1.0, 0.0
        %v760 = vsel %vm744, 1.0, 0.0
        %v761 = vsel %vm745, 1.0, 0.0
        %v762 = vsel %vm746, 1.0, 0.0
        %v763 = vsel %vm747, 1.0, 0.0
        %v764 = vsel %vm748, 1.0, 0.0
        %v765 = vsel %vm749, 1.0, 0.0
        %v766 = vsel %vm750, 1.0, 0.0
        %v767 = vsel %vm751, 1.0, 0.0
        %v768 = vsel %vm752, 1.0, 0.0
        %v769 = vsel %vm753, 1.0, 0.0
        %v770 = vsel %vm754, 1.0, 0.0
        %v771 = vsel %vm755, 1.0, 0.0
        %772 = vadd.xlane.f32.xlu0 %v720
        %v773 = vpop.xlane.xlu0 %772
        %774 = vadd.xlane.f32.xlu0 %v721
        %v775 = vpop.xlane.xlu0 %774
        %776 = vadd.xlane.f32.xlu0 %v722
        %v777 = vpop.xlane.xlu0 %776
        %778 = vadd.xlane.f32.xlu0 %v723
        %v779 = vpop.xlane.xlu0 %778
        %780 = vadd.xlane.f32.xlu0 %v724
        %v781 = vpop.xlane.xlu0 %780
        %782 = vadd.xlane.f32.xlu0 %v725
        %v783 = vpop.xlane.xlu0 %782
        %784 = vadd.xlane.f32.xlu0 %v726
        %v785 = vpop.xlane.xlu0 %784
        %786 = vadd.xlane.f32.xlu0 %v727
        %v787 = vpop.xlane.xlu0 %786
        %788 = vadd.xlane.f32.xlu0 %v728
        %v789 = vpop.xlane.xlu0 %788
        %790 = vadd.xlane.f32.xlu0 %v729
        %v791 = vpop.xlane.xlu0 %790
        %792 = vadd.xlane.f32.xlu0 %v730
        %v793 = vpop.xlane.xlu0 %792
        %794 = vadd.xlane.f32.xlu0 %v731
        %v795 = vpop.xlane.xlu0 %794
        %796 = vadd.xlane.f32.xlu0 %v732
        %v797 = vpop.xlane.xlu0 %796
        %798 = vadd.xlane.f32.xlu0 %v733
        %v799 = vpop.xlane.xlu0 %798
        %800 = vadd.xlane.f32.xlu0 %v734
        %v801 = vpop.xlane.xlu0 %800
        %802 = vadd.xlane.f32.xlu0 %v735
        %v803 = vpop.xlane.xlu0 %802
        %804 = vadd.xlane.f32.xlu0 %v756
        %v805 = vpop.xlane.xlu0 %804
        %806 = vadd.xlane.f32.xlu0 %v757
        %v807 = vpop.xlane.xlu0 %806
        %808 = vadd.xlane.f32.xlu0 %v758
        %v809 = vpop.xlane.xlu0 %808
        %810 = vadd.xlane.f32.xlu0 %v759
        %v811 = vpop.xlane.xlu0 %810
        %812 = vadd.xlane.f32.xlu0 %v760
        %v813 = vpop.xlane.xlu0 %812
        %814 = vadd.xlane.f32.xlu0 %v761
        %v815 = vpop.xlane.xlu0 %814
        %816 = vadd.xlane.f32.xlu0 %v762
        %v817 = vpop.xlane.xlu0 %816
        %818 = vadd.xlane.f32.xlu0 %v763
        %v819 = vpop.xlane.xlu0 %818
        %820 = vadd.xlane.f32.xlu0 %v764
        %v821 = vpop.xlane.xlu0 %820
        %822 = vadd.xlane.f32.xlu0 %v765
        %v823 = vpop.xlane.xlu0 %822
        %824 = vadd.xlane.f32.xlu0 %v766
        %v825 = vpop.xlane.xlu0 %824
        %826 = vadd.xlane.f32.xlu0 %v767
        %v827 = vpop.xlane.xlu0 %826
        %828 = vadd.xlane.f32.xlu0 %v768
        %v829 = vpop.xlane.xlu0 %828
        %830 = vadd.xlane.f32.xlu0 %v769
        %v831 = vpop.xlane.xlu0 %830
        %832 = vadd.xlane.f32.xlu0 %v770
        %v833 = vpop.xlane.xlu0 %832
        %834 = vadd.xlane.f32.xlu0 %v771
        %v835 = vpop.xlane.xlu0 %834
        %v836 = vmin.f32 %v773, %v805
        %v837 = vmin.f32 %v775, %v807
        %v838 = vmin.f32 %v777, %v809
        %v839 = vmin.f32 %v779, %v811
        %v840 = vmin.f32 %v781, %v813
        %v841 = vmin.f32 %v783, %v815
        %v842 = vmin.f32 %v785, %v817
        %v843 = vmin.f32 %v787, %v819
        %v844 = vmin.f32 %v789, %v821
        %v845 = vmin.f32 %v791, %v823
        %v846 = vmin.f32 %v793, %v825
        %v847 = vmin.f32 %v795, %v827
        %v848 = vmin.f32 %v797, %v829
        %v849 = vmin.f32 %v799, %v831
        %v850 = vmin.f32 %v801, %v833
        %v851 = vmin.f32 %v803, %v835
        %v852 = vmax.f32 %v773, 1.0
        %v853 = vmax.f32 %v775, 1.0
        %v854 = vmax.f32 %v777, 1.0
        %v855 = vmax.f32 %v779, 1.0
        %v856 = vmax.f32 %v781, 1.0
        %v857 = vmax.f32 %v783, 1.0
        %v858 = vmax.f32 %v785, 1.0
        %v859 = vmax.f32 %v787, 1.0
        %v860 = vmax.f32 %v789, 1.0
        %v861 = vmax.f32 %v791, 1.0
        %v862 = vmax.f32 %v793, 1.0
        %v863 = vmax.f32 %v795, 1.0
        %v864 = vmax.f32 %v797, 1.0
        %v865 = vmax.f32 %v799, 1.0
        %v866 = vmax.f32 %v801, 1.0
        %v867 = vmax.f32 %v803, 1.0
        %v868 = vrcp.pop %v852
        %v869 = vmul.f32 %v836, %v868
        %v870 = vrcp.pop %v853
        %v871 = vmul.f32 %v837, %v870
        %v872 = vrcp.pop %v854
        %v873 = vmul.f32 %v838, %v872
        %v874 = vrcp.pop %v855
        %v875 = vmul.f32 %v839, %v874
        %v876 = vrcp.pop %v856
        %v877 = vmul.f32 %v840, %v876
        %v878 = vrcp.pop %v857
        %v879 = vmul.f32 %v841, %v878
        %v880 = vrcp.pop %v858
        %v881 = vmul.f32 %v842, %v880
        %v882 = vrcp.pop %v859
        %v883 = vmul.f32 %v843, %v882
        %v884 = vrcp.pop %v860
        %v885 = vmul.f32 %v844, %v884
        %v886 = vrcp.pop %v861
        %v887 = vmul.f32 %v845, %v886
        %v888 = vrcp.pop %v862
        %v889 = vmul.f32 %v846, %v888
        %v890 = vrcp.pop %v863
        %v891 = vmul.f32 %v847, %v890
        %v892 = vrcp.pop %v864
        %v893 = vmul.f32 %v848, %v892
        %v894 = vrcp.pop %v865
        %v895 = vmul.f32 %v849, %v894
        %v896 = vrcp.pop %v866
        %v897 = vmul.f32 %v850, %v896
        %v898 = vrcp.pop %v867
        %v899 = vmul.f32 %v851, %v898
        %vm900 = vcmp.lt.s32.totalorder %v184, %v700
        %vm901 = vcmp.lt.s32.totalorder %v185, %v700
        %vm902 = vcmp.lt.s32.totalorder %v186, %v700
        %vm903 = vcmp.lt.s32.totalorder %v187, %v700
        %vm904 = vcmp.lt.s32.totalorder %v188, %v700
        %vm905 = vcmp.lt.s32.totalorder %v189, %v700
        %vm906 = vcmp.lt.s32.totalorder %v190, %v700
        %vm907 = vcmp.lt.s32.totalorder %v191, %v700
        %vm908 = vcmp.lt.s32.totalorder %v192, %v700
        %vm909 = vcmp.lt.s32.totalorder %v193, %v700
        %vm910 = vcmp.lt.s32.totalorder %v194, %v700
        %vm911 = vcmp.lt.s32.totalorder %v195, %v700
        %vm912 = vcmp.lt.s32.totalorder %v196, %v700
        %vm913 = vcmp.lt.s32.totalorder %v197, %v700
        %vm914 = vcmp.lt.s32.totalorder %v198, %v700
        %vm915 = vcmp.lt.s32.totalorder %v199, %v700
        %v916 = vsel %vm900, %v869, 0.0
        %v917 = vsel %vm901, %v871, 0.0
        %v918 = vsel %vm902, %v873, 0.0
        %v919 = vsel %vm903, %v875, 0.0
        %v920 = vsel %vm904, %v877, 0.0
        %v921 = vsel %vm905, %v879, 0.0
        %v922 = vsel %vm906, %v881, 0.0
        %v923 = vsel %vm907, %v883, 0.0
        %v924 = vsel %vm908, %v885, 0.0
        %v925 = vsel %vm909, %v887, 0.0
        %v926 = vsel %vm910, %v889, 0.0
        %v927 = vsel %vm911, %v891, 0.0
        %v928 = vsel %vm912, %v893, 0.0
        %v929 = vsel %vm913, %v895, 0.0
        %v930 = vsel %vm914, %v897, 0.0
        %v931 = vsel %vm915, %v899, 0.0
        %v932 = vsel %vm538, %v916, 0.0
        %v933 = vsel %vm538, %v917, 0.0
        %v934 = vadd.f32 %v932, %v933
        %v935 = vsel %vm538, %v918, 0.0
        %v936 = vadd.f32 %v934, %v935
        %v937 = vsel %vm538, %v919, 0.0
        %v938 = vadd.f32 %v936, %v937
        %v939 = vsel %vm538, %v920, 0.0
        %v940 = vadd.f32 %v938, %v939
        %v941 = vsel %vm538, %v921, 0.0
        %v942 = vadd.f32 %v940, %v941
        %v943 = vsel %vm538, %v922, 0.0
        %v944 = vadd.f32 %v942, %v943
        %v945 = vsel %vm538, %v923, 0.0
        %v946 = vadd.f32 %v944, %v945
        %v947 = vsel %vm538, %v924, 0.0
        %v948 = vadd.f32 %v946, %v947
        %v949 = vsel %vm538, %v925, 0.0
        %v950 = vadd.f32 %v948, %v949
        %v951 = vsel %vm538, %v926, 0.0
        %v952 = vadd.f32 %v950, %v951
        %v953 = vsel %vm538, %v927, 0.0
        %v954 = vadd.f32 %v952, %v953
        %v955 = vsel %vm538, %v928, 0.0
        %v956 = vadd.f32 %v954, %v955
        %v957 = vsel %vm538, %v929, 0.0
        %v958 = vadd.f32 %v956, %v957
        %v959 = vsel %vm538, %v930, 0.0
        %v960 = vadd.f32 %v958, %v959
        %v961 = vsel %vm538, %v931, 0.0
        %v962 = vadd.f32 %v960, %v961
        %963 = vadd.xlane.f32.xlu0 %v962
        %v964 = vpop.xlane.xlu0 %963
        %v965 = vrot.slane %v964, 4
        %v966 = vadd.f32 %v964, %v965
        %v967 = vrot.slane %v966, 2
        %v968 = vadd.f32 %v966, %v967
        %v969 = vrot.slane %v968, 1
        %v970 = vadd.f32 %v968, %v969
        %s971 = vtos %v970
        %v972 = vstv %s971
        %vm973 = vcmp.gt.s32.totalorder %v700, 0
        %v974 = vsel %vm973, %v700, 0
        %v975 = vcvt.s32.f32 %v974
        %vm976 = vcmp.gt.f32.partialorder %v972, 0.0
        %vm977 = vcmp.gt.s32.totalorder %v700, 0
        %vm978 = vmand %vm976, %vm977
        %v979 = vmax.f32 %v975, 1.0
        %v980 = vrcp.pop %v979
        %v981 = vmul.f32 %v972, %v980
        %v982 = vsel %vm978, %v981, 1.0
        %v983 = vlog2.pop %v982
        %v984 = vmul.f32 %v983, 0.6931472
        %v985 = vadd.f32 %v592, %v984
        %v986 = vsel %vm978, 1.0, 0.0
        %v987 = vmul.f32 %v593, %v986
        %v988 = vlaneseq
        %v989 = vshrl.u32 %v988, 7
        %v990 = vsub.s32 0, %v989
        %v991 = vrot.slane %v231, %v990
        %992 = vxpose.xlu0.b32.start [1/16] %v991, 128
        %993 = vxpose.xlu0.b32.cont [2/16] %v991, 128
        %994 = vxpose.xlu0.b32.cont [3/16] %v991, 128
        %995 = vxpose.xlu0.b32.cont [4/16] %v991, 128
        %996 = vxpose.xlu0.b32.cont [5/16] %v991, 128
        %997 = vxpose.xlu0.b32.cont [6/16] %v991, 128
        %998 = vxpose.xlu0.b32.cont [7/16] %v991, 128
        %999 = vxpose.xlu0.b32.cont [8/16] %v991, 128
        %1000 = vxpose.xlu0.b32.cont [9/16] %v991, 128
        %1001 = vxpose.xlu0.b32.cont [10/16] %v991, 128
        %1002 = vxpose.xlu0.b32.cont [11/16] %v991, 128
        %1003 = vxpose.xlu0.b32.cont [12/16] %v991, 128
        %1004 = vxpose.xlu0.b32.cont [13/16] %v991, 128
        %1005 = vxpose.xlu0.b32.cont [14/16] %v991, 128
        %1006 = vxpose.xlu0.b32.cont [15/16] %v991, 128
        %1007 = vxpose.xlu0.b32.end [16/16] %v991, 128
        %v1008 = vpop.trf.xlu0
        %v1009 = vpop.trf.xlu0
        %v1010 = vpop.trf.xlu0
        %v1011 = vpop.trf.xlu0
        %v1012 = vpop.trf.xlu0
        %v1013 = vpop.trf.xlu0
        %v1014 = vpop.trf.xlu0
        %v1015 = vpop.trf.xlu0
        %v1016 = vpop.trf.xlu0
        %v1017 = vpop.trf.xlu0
        %v1018 = vpop.trf.xlu0
        %v1019 = vpop.trf.xlu0
        %v1020 = vpop.trf.xlu0
        %v1021 = vpop.trf.xlu0
        %v1022 = vpop.trf.xlu0
        %v1023 = vpop.trf.xlu0
        %vm1024 = vcmp.eq.s32.totalorder %v1008, %v991
        %vm1025 = vcmp.eq.s32.totalorder %v1009, %v991
        %vm1026 = vcmp.eq.s32.totalorder %v1010, %v991
        %vm1027 = vcmp.eq.s32.totalorder %v1011, %v991
        %vm1028 = vcmp.eq.s32.totalorder %v1012, %v991
        %vm1029 = vcmp.eq.s32.totalorder %v1013, %v991
        %vm1030 = vcmp.eq.s32.totalorder %v1014, %v991
        %vm1031 = vcmp.eq.s32.totalorder %v1015, %v991
        %vm1032 = vcmp.eq.s32.totalorder %v1016, %v991
        %vm1033 = vcmp.eq.s32.totalorder %v1017, %v991
        %vm1034 = vcmp.eq.s32.totalorder %v1018, %v991
        %vm1035 = vcmp.eq.s32.totalorder %v1019, %v991
        %vm1036 = vcmp.eq.s32.totalorder %v1020, %v991
        %vm1037 = vcmp.eq.s32.totalorder %v1021, %v991
        %vm1038 = vcmp.eq.s32.totalorder %v1022, %v991
        %vm1039 = vcmp.eq.s32.totalorder %v1023, %v991
        %v1040 = vlaneseq
        %v1041 = vshrl.u32 %v1040, 7
        %v1042 = vsub.s32 0, %v1041
        %v1043 = vrot.slane %v233, %v1042
        %vm1044 = vcmp.eq.s32.totalorder %v1008, %v1043
        %vm1045 = vcmp.eq.s32.totalorder %v1009, %v1043
        %vm1046 = vcmp.eq.s32.totalorder %v1010, %v1043
        %vm1047 = vcmp.eq.s32.totalorder %v1011, %v1043
        %vm1048 = vcmp.eq.s32.totalorder %v1012, %v1043
        %vm1049 = vcmp.eq.s32.totalorder %v1013, %v1043
        %vm1050 = vcmp.eq.s32.totalorder %v1014, %v1043
        %vm1051 = vcmp.eq.s32.totalorder %v1015, %v1043
        %vm1052 = vcmp.eq.s32.totalorder %v1016, %v1043
        %vm1053 = vcmp.eq.s32.totalorder %v1017, %v1043
        %vm1054 = vcmp.eq.s32.totalorder %v1018, %v1043
        %vm1055 = vcmp.eq.s32.totalorder %v1019, %v1043
        %vm1056 = vcmp.eq.s32.totalorder %v1020, %v1043
        %vm1057 = vcmp.eq.s32.totalorder %v1021, %v1043
        %vm1058 = vcmp.eq.s32.totalorder %v1022, %v1043
        %vm1059 = vcmp.eq.s32.totalorder %v1023, %v1043
        %vm1060 = vmand %vm666, %vm1024
        %vm1061 = vmand %vm667, %vm1025
        %vm1062 = vmand %vm668, %vm1026
        %vm1063 = vmand %vm669, %vm1027
        %vm1064 = vmand %vm670, %vm1028
        %vm1065 = vmand %vm671, %vm1029
        %vm1066 = vmand %vm672, %vm1030
        %vm1067 = vmand %vm673, %vm1031
        %vm1068 = vmand %vm674, %vm1032
        %vm1069 = vmand %vm675, %vm1033
        %vm1070 = vmand %vm676, %vm1034
        %vm1071 = vmand %vm677, %vm1035
        %vm1072 = vmand %vm678, %vm1036
        %vm1073 = vmand %vm679, %vm1037
        %vm1074 = vmand %vm680, %vm1038
        %vm1075 = vmand %vm681, %vm1039
        %vm1076 = vmand %vm682, %vm1044
        %vm1077 = vmand %vm683, %vm1045
        %vm1078 = vmand %vm684, %vm1046
        %vm1079 = vmand %vm685, %vm1047
        %vm1080 = vmand %vm686, %vm1048
        %vm1081 = vmand %vm687, %vm1049
        %vm1082 = vmand %vm688, %vm1050
        %vm1083 = vmand %vm689, %vm1051
        %vm1084 = vmand %vm690, %vm1052
        %vm1085 = vmand %vm691, %vm1053
        %vm1086 = vmand %vm692, %vm1054
        %vm1087 = vmand %vm693, %vm1055
        %vm1088 = vmand %vm694, %vm1056
        %vm1089 = vmand %vm695, %vm1057
        %vm1090 = vmand %vm696, %vm1058
        %vm1091 = vmand %vm697, %vm1059
        %s1092 = sadd.s32 %s174, 4294967294
        %s1093 = sadd.s32 %s176, 4294967294
        %v1094 = vstv %s1092
        %vm1095 = vcmp.lt.s32.totalorder %v182, %v1094
        %v1096 = vsel %vm1095, 1, 0
        %vm1097 = vcmp.eq.s32.totalorder %v1096, 1
        %vm1098 = vmand %vm1060, %vm1097
        %vm1099 = vmand %vm1061, %vm1097
        %vm1100 = vmand %vm1062, %vm1097
        %vm1101 = vmand %vm1063, %vm1097
        %vm1102 = vmand %vm1064, %vm1097
        %vm1103 = vmand %vm1065, %vm1097
        %vm1104 = vmand %vm1066, %vm1097
        %vm1105 = vmand %vm1067, %vm1097
        %vm1106 = vmand %vm1068, %vm1097
        %vm1107 = vmand %vm1069, %vm1097
        %vm1108 = vmand %vm1070, %vm1097
        %vm1109 = vmand %vm1071, %vm1097
        %vm1110 = vmand %vm1072, %vm1097
        %vm1111 = vmand %vm1073, %vm1097
        %vm1112 = vmand %vm1074, %vm1097
        %vm1113 = vmand %vm1075, %vm1097
        %v1114 = vsel %vm1098, 1.0, 0.0
        %v1115 = vsel %vm1099, 1.0, 0.0
        %v1116 = vsel %vm1100, 1.0, 0.0
        %v1117 = vsel %vm1101, 1.0, 0.0
        %v1118 = vsel %vm1102, 1.0, 0.0
        %v1119 = vsel %vm1103, 1.0, 0.0
        %v1120 = vsel %vm1104, 1.0, 0.0
        %v1121 = vsel %vm1105, 1.0, 0.0
        %v1122 = vsel %vm1106, 1.0, 0.0
        %v1123 = vsel %vm1107, 1.0, 0.0
        %v1124 = vsel %vm1108, 1.0, 0.0
        %v1125 = vsel %vm1109, 1.0, 0.0
        %v1126 = vsel %vm1110, 1.0, 0.0
        %v1127 = vsel %vm1111, 1.0, 0.0
        %v1128 = vsel %vm1112, 1.0, 0.0
        %v1129 = vsel %vm1113, 1.0, 0.0
        %v1130 = vstv %s1093
        %vm1131 = vcmp.lt.s32.totalorder %v182, %v1130
        %v1132 = vsel %vm1131, 1, 0
        %vm1133 = vcmp.eq.s32.totalorder %v1132, 1
        %vm1134 = vmand %vm1076, %vm1133
        %vm1135 = vmand %vm1077, %vm1133
        %vm1136 = vmand %vm1078, %vm1133
        %vm1137 = vmand %vm1079, %vm1133
        %vm1138 = vmand %vm1080, %vm1133
        %vm1139 = vmand %vm1081, %vm1133
        %vm1140 = vmand %vm1082, %vm1133
        %vm1141 = vmand %vm1083, %vm1133
        %vm1142 = vmand %vm1084, %vm1133
        %vm1143 = vmand %vm1085, %vm1133
        %vm1144 = vmand %vm1086, %vm1133
        %vm1145 = vmand %vm1087, %vm1133
        %vm1146 = vmand %vm1088, %vm1133
        %vm1147 = vmand %vm1089, %vm1133
        %vm1148 = vmand %vm1090, %vm1133
        %vm1149 = vmand %vm1091, %vm1133
        %v1150 = vsel %vm1134, 1.0, 0.0
        %v1151 = vsel %vm1135, 1.0, 0.0
        %v1152 = vsel %vm1136, 1.0, 0.0
        %v1153 = vsel %vm1137, 1.0, 0.0
        %v1154 = vsel %vm1138, 1.0, 0.0
        %v1155 = vsel %vm1139, 1.0, 0.0
        %v1156 = vsel %vm1140, 1.0, 0.0
        %v1157 = vsel %vm1141, 1.0, 0.0
        %v1158 = vsel %vm1142, 1.0, 0.0
        %v1159 = vsel %vm1143, 1.0, 0.0
        %v1160 = vsel %vm1144, 1.0, 0.0
        %v1161 = vsel %vm1145, 1.0, 0.0
        %v1162 = vsel %vm1146, 1.0, 0.0
        %v1163 = vsel %vm1147, 1.0, 0.0
        %v1164 = vsel %vm1148, 1.0, 0.0
        %v1165 = vsel %vm1149, 1.0, 0.0
        %1166 = vadd.xlane.f32.xlu0 %v1114
        %v1167 = vpop.xlane.xlu0 %1166
        %1168 = vadd.xlane.f32.xlu0 %v1115
        %v1169 = vpop.xlane.xlu0 %1168
        %1170 = vadd.xlane.f32.xlu0 %v1116
        %v1171 = vpop.xlane.xlu0 %1170
        %1172 = vadd.xlane.f32.xlu0 %v1117
        %v1173 = vpop.xlane.xlu0 %1172
        %1174 = vadd.xlane.f32.xlu0 %v1118
        %v1175 = vpop.xlane.xlu0 %1174
        %1176 = vadd.xlane.f32.xlu0 %v1119
        %v1177 = vpop.xlane.xlu0 %1176
        %1178 = vadd.xlane.f32.xlu0 %v1120
        %v1179 = vpop.xlane.xlu0 %1178
        %1180 = vadd.xlane.f32.xlu0 %v1121
        %v1181 = vpop.xlane.xlu0 %1180
        %1182 = vadd.xlane.f32.xlu0 %v1122
        %v1183 = vpop.xlane.xlu0 %1182
        %1184 = vadd.xlane.f32.xlu0 %v1123
        %v1185 = vpop.xlane.xlu0 %1184
        %1186 = vadd.xlane.f32.xlu0 %v1124
        %v1187 = vpop.xlane.xlu0 %1186
        %1188 = vadd.xlane.f32.xlu0 %v1125
        %v1189 = vpop.xlane.xlu0 %1188
        %1190 = vadd.xlane.f32.xlu0 %v1126
        %v1191 = vpop.xlane.xlu0 %1190
        %1192 = vadd.xlane.f32.xlu0 %v1127
        %v1193 = vpop.xlane.xlu0 %1192
        %1194 = vadd.xlane.f32.xlu0 %v1128
        %v1195 = vpop.xlane.xlu0 %1194
        %1196 = vadd.xlane.f32.xlu0 %v1129
        %v1197 = vpop.xlane.xlu0 %1196
        %1198 = vadd.xlane.f32.xlu0 %v1150
        %v1199 = vpop.xlane.xlu0 %1198
        %1200 = vadd.xlane.f32.xlu0 %v1151
        %v1201 = vpop.xlane.xlu0 %1200
        %1202 = vadd.xlane.f32.xlu0 %v1152
        %v1203 = vpop.xlane.xlu0 %1202
        %1204 = vadd.xlane.f32.xlu0 %v1153
        %v1205 = vpop.xlane.xlu0 %1204
        %1206 = vadd.xlane.f32.xlu0 %v1154
        %v1207 = vpop.xlane.xlu0 %1206
        %1208 = vadd.xlane.f32.xlu0 %v1155
        %v1209 = vpop.xlane.xlu0 %1208
        %1210 = vadd.xlane.f32.xlu0 %v1156
        %v1211 = vpop.xlane.xlu0 %1210
        %1212 = vadd.xlane.f32.xlu0 %v1157
        %v1213 = vpop.xlane.xlu0 %1212
        %1214 = vadd.xlane.f32.xlu0 %v1158
        %v1215 = vpop.xlane.xlu0 %1214
        %1216 = vadd.xlane.f32.xlu0 %v1159
        %v1217 = vpop.xlane.xlu0 %1216
        %1218 = vadd.xlane.f32.xlu0 %v1160
        %v1219 = vpop.xlane.xlu0 %1218
        %1220 = vadd.xlane.f32.xlu0 %v1161
        %v1221 = vpop.xlane.xlu0 %1220
        %1222 = vadd.xlane.f32.xlu0 %v1162
        %v1223 = vpop.xlane.xlu0 %1222
        %1224 = vadd.xlane.f32.xlu0 %v1163
        %v1225 = vpop.xlane.xlu0 %1224
        %1226 = vadd.xlane.f32.xlu0 %v1164
        %v1227 = vpop.xlane.xlu0 %1226
        %1228 = vadd.xlane.f32.xlu0 %v1165
        %v1229 = vpop.xlane.xlu0 %1228
        %v1230 = vmin.f32 %v1167, %v1199
        %v1231 = vmin.f32 %v1169, %v1201
        %v1232 = vmin.f32 %v1171, %v1203
        %v1233 = vmin.f32 %v1173, %v1205
        %v1234 = vmin.f32 %v1175, %v1207
        %v1235 = vmin.f32 %v1177, %v1209
        %v1236 = vmin.f32 %v1179, %v1211
        %v1237 = vmin.f32 %v1181, %v1213
        %v1238 = vmin.f32 %v1183, %v1215
        %v1239 = vmin.f32 %v1185, %v1217
        %v1240 = vmin.f32 %v1187, %v1219
        %v1241 = vmin.f32 %v1189, %v1221
        %v1242 = vmin.f32 %v1191, %v1223
        %v1243 = vmin.f32 %v1193, %v1225
        %v1244 = vmin.f32 %v1195, %v1227
        %v1245 = vmin.f32 %v1197, %v1229
        %v1246 = vmax.f32 %v1167, 1.0
        %v1247 = vmax.f32 %v1169, 1.0
        %v1248 = vmax.f32 %v1171, 1.0
        %v1249 = vmax.f32 %v1173, 1.0
        %v1250 = vmax.f32 %v1175, 1.0
        %v1251 = vmax.f32 %v1177, 1.0
        %v1252 = vmax.f32 %v1179, 1.0
        %v1253 = vmax.f32 %v1181, 1.0
        %v1254 = vmax.f32 %v1183, 1.0
        %v1255 = vmax.f32 %v1185, 1.0
        %v1256 = vmax.f32 %v1187, 1.0
        %v1257 = vmax.f32 %v1189, 1.0
        %v1258 = vmax.f32 %v1191, 1.0
        %v1259 = vmax.f32 %v1193, 1.0
        %v1260 = vmax.f32 %v1195, 1.0
        %v1261 = vmax.f32 %v1197, 1.0
        %v1262 = vrcp.pop %v1246
        %v1263 = vmul.f32 %v1230, %v1262
        %v1264 = vrcp.pop %v1247
        %v1265 = vmul.f32 %v1231, %v1264
        %v1266 = vrcp.pop %v1248
        %v1267 = vmul.f32 %v1232, %v1266
        %v1268 = vrcp.pop %v1249
        %v1269 = vmul.f32 %v1233, %v1268
        %v1270 = vrcp.pop %v1250
        %v1271 = vmul.f32 %v1234, %v1270
        %v1272 = vrcp.pop %v1251
        %v1273 = vmul.f32 %v1235, %v1272
        %v1274 = vrcp.pop %v1252
        %v1275 = vmul.f32 %v1236, %v1274
        %v1276 = vrcp.pop %v1253
        %v1277 = vmul.f32 %v1237, %v1276
        %v1278 = vrcp.pop %v1254
        %v1279 = vmul.f32 %v1238, %v1278
        %v1280 = vrcp.pop %v1255
        %v1281 = vmul.f32 %v1239, %v1280
        %v1282 = vrcp.pop %v1256
        %v1283 = vmul.f32 %v1240, %v1282
        %v1284 = vrcp.pop %v1257
        %v1285 = vmul.f32 %v1241, %v1284
        %v1286 = vrcp.pop %v1258
        %v1287 = vmul.f32 %v1242, %v1286
        %v1288 = vrcp.pop %v1259
        %v1289 = vmul.f32 %v1243, %v1288
        %v1290 = vrcp.pop %v1260
        %v1291 = vmul.f32 %v1244, %v1290
        %v1292 = vrcp.pop %v1261
        %v1293 = vmul.f32 %v1245, %v1292
        %vm1294 = vcmp.lt.s32.totalorder %v184, %v1094
        %vm1295 = vcmp.lt.s32.totalorder %v185, %v1094
        %vm1296 = vcmp.lt.s32.totalorder %v186, %v1094
        %vm1297 = vcmp.lt.s32.totalorder %v187, %v1094
        %vm1298 = vcmp.lt.s32.totalorder %v188, %v1094
        %vm1299 = vcmp.lt.s32.totalorder %v189, %v1094
        %vm1300 = vcmp.lt.s32.totalorder %v190, %v1094
        %vm1301 = vcmp.lt.s32.totalorder %v191, %v1094
        %vm1302 = vcmp.lt.s32.totalorder %v192, %v1094
        %vm1303 = vcmp.lt.s32.totalorder %v193, %v1094
        %vm1304 = vcmp.lt.s32.totalorder %v194, %v1094
        %vm1305 = vcmp.lt.s32.totalorder %v195, %v1094
        %vm1306 = vcmp.lt.s32.totalorder %v196, %v1094
        %vm1307 = vcmp.lt.s32.totalorder %v197, %v1094
        %vm1308 = vcmp.lt.s32.totalorder %v198, %v1094
        %vm1309 = vcmp.lt.s32.totalorder %v199, %v1094
        %v1310 = vsel %vm1294, %v1263, 0.0
        %v1311 = vsel %vm1295, %v1265, 0.0
        %v1312 = vsel %vm1296, %v1267, 0.0
        %v1313 = vsel %vm1297, %v1269, 0.0
        %v1314 = vsel %vm1298, %v1271, 0.0
        %v1315 = vsel %vm1299, %v1273, 0.0
        %v1316 = vsel %vm1300, %v1275, 0.0
        %v1317 = vsel %vm1301, %v1277, 0.0
        %v1318 = vsel %vm1302, %v1279, 0.0
        %v1319 = vsel %vm1303, %v1281, 0.0
        %v1320 = vsel %vm1304, %v1283, 0.0
        %v1321 = vsel %vm1305, %v1285, 0.0
        %v1322 = vsel %vm1306, %v1287, 0.0
        %v1323 = vsel %vm1307, %v1289, 0.0
        %v1324 = vsel %vm1308, %v1291, 0.0
        %v1325 = vsel %vm1309, %v1293, 0.0
        %v1326 = vsel %vm538, %v1310, 0.0
        %v1327 = vsel %vm538, %v1311, 0.0
        %v1328 = vadd.f32 %v1326, %v1327
        %v1329 = vsel %vm538, %v1312, 0.0
        %v1330 = vadd.f32 %v1328, %v1329
        %v1331 = vsel %vm538, %v1313, 0.0
        %v1332 = vadd.f32 %v1330, %v1331
        %v1333 = vsel %vm538, %v1314, 0.0
        %v1334 = vadd.f32 %v1332, %v1333
        %v1335 = vsel %vm538, %v1315, 0.0
        %v1336 = vadd.f32 %v1334, %v1335
        %v1337 = vsel %vm538, %v1316, 0.0
        %v1338 = vadd.f32 %v1336, %v1337
        %v1339 = vsel %vm538, %v1317, 0.0
        %v1340 = vadd.f32 %v1338, %v1339
        %v1341 = vsel %vm538, %v1318, 0.0
        %v1342 = vadd.f32 %v1340, %v1341
        %v1343 = vsel %vm538, %v1319, 0.0
        %v1344 = vadd.f32 %v1342, %v1343
        %v1345 = vsel %vm538, %v1320, 0.0
        %v1346 = vadd.f32 %v1344, %v1345
        %v1347 = vsel %vm538, %v1321, 0.0
        %v1348 = vadd.f32 %v1346, %v1347
        %v1349 = vsel %vm538, %v1322, 0.0
        %v1350 = vadd.f32 %v1348, %v1349
        %v1351 = vsel %vm538, %v1323, 0.0
        %v1352 = vadd.f32 %v1350, %v1351
        %v1353 = vsel %vm538, %v1324, 0.0
        %v1354 = vadd.f32 %v1352, %v1353
        %v1355 = vsel %vm538, %v1325, 0.0
        %v1356 = vadd.f32 %v1354, %v1355
        %1357 = vadd.xlane.f32.xlu0 %v1356
        %v1358 = vpop.xlane.xlu0 %1357
        %v1359 = vrot.slane %v1358, 4
        %v1360 = vadd.f32 %v1358, %v1359
        %v1361 = vrot.slane %v1360, 2
        %v1362 = vadd.f32 %v1360, %v1361
        %v1363 = vrot.slane %v1362, 1
        %v1364 = vadd.f32 %v1362, %v1363
        %s1365 = vtos %v1364
        %v1366 = vstv %s1365
        %vm1367 = vcmp.gt.s32.totalorder %v1094, 0
        %v1368 = vsel %vm1367, %v1094, 0
        %v1369 = vcvt.s32.f32 %v1368
        %vm1370 = vcmp.gt.f32.partialorder %v1366, 0.0
        %vm1371 = vcmp.gt.s32.totalorder %v1094, 0
        %vm1372 = vmand %vm1370, %vm1371
        %v1373 = vmax.f32 %v1369, 1.0
        %v1374 = vrcp.pop %v1373
        %v1375 = vmul.f32 %v1366, %v1374
        %v1376 = vsel %vm1372, %v1375, 1.0
        %v1377 = vlog2.pop %v1376
        %v1378 = vmul.f32 %v1377, 0.6931472
        %v1379 = vadd.f32 %v985, %v1378
        %v1380 = vsel %vm1372, 1.0, 0.0
        %v1381 = vmul.f32 %v987, %v1380
        %v1382 = vlaneseq
        %v1383 = vshrl.u32 %v1382, 7
        %v1384 = vsub.s32 0, %v1383
        %v1385 = vrot.slane %v235, %v1384
        %1386 = vxpose.xlu0.b32.start [1/16] %v1385, 128
        %1387 = vxpose.xlu0.b32.cont [2/16] %v1385, 128
        %1388 = vxpose.xlu0.b32.cont [3/16] %v1385, 128
        %1389 = vxpose.xlu0.b32.cont [4/16] %v1385, 128
        %1390 = vxpose.xlu0.b32.cont [5/16] %v1385, 128
        %1391 = vxpose.xlu0.b32.cont [6/16] %v1385, 128
        %1392 = vxpose.xlu0.b32.cont [7/16] %v1385, 128
        %1393 = vxpose.xlu0.b32.cont [8/16] %v1385, 128
        %1394 = vxpose.xlu0.b32.cont [9/16] %v1385, 128
        %1395 = vxpose.xlu0.b32.cont [10/16] %v1385, 128
        %1396 = vxpose.xlu0.b32.cont [11/16] %v1385, 128
        %1397 = vxpose.xlu0.b32.cont [12/16] %v1385, 128
        %1398 = vxpose.xlu0.b32.cont [13/16] %v1385, 128
        %1399 = vxpose.xlu0.b32.cont [14/16] %v1385, 128
        %1400 = vxpose.xlu0.b32.cont [15/16] %v1385, 128
        %1401 = vxpose.xlu0.b32.end [16/16] %v1385, 128
        %v1402 = vpop.trf.xlu0
        %v1403 = vpop.trf.xlu0
        %v1404 = vpop.trf.xlu0
        %v1405 = vpop.trf.xlu0
        %v1406 = vpop.trf.xlu0
        %v1407 = vpop.trf.xlu0
        %v1408 = vpop.trf.xlu0
        %v1409 = vpop.trf.xlu0
        %v1410 = vpop.trf.xlu0
        %v1411 = vpop.trf.xlu0
        %v1412 = vpop.trf.xlu0
        %v1413 = vpop.trf.xlu0
        %v1414 = vpop.trf.xlu0
        %v1415 = vpop.trf.xlu0
        %v1416 = vpop.trf.xlu0
        %v1417 = vpop.trf.xlu0
        %vm1418 = vcmp.eq.s32.totalorder %v1402, %v1385
        %vm1419 = vcmp.eq.s32.totalorder %v1403, %v1385
        %vm1420 = vcmp.eq.s32.totalorder %v1404, %v1385
        %vm1421 = vcmp.eq.s32.totalorder %v1405, %v1385
        %vm1422 = vcmp.eq.s32.totalorder %v1406, %v1385
        %vm1423 = vcmp.eq.s32.totalorder %v1407, %v1385
        %vm1424 = vcmp.eq.s32.totalorder %v1408, %v1385
        %vm1425 = vcmp.eq.s32.totalorder %v1409, %v1385
        %vm1426 = vcmp.eq.s32.totalorder %v1410, %v1385
        %vm1427 = vcmp.eq.s32.totalorder %v1411, %v1385
        %vm1428 = vcmp.eq.s32.totalorder %v1412, %v1385
        %vm1429 = vcmp.eq.s32.totalorder %v1413, %v1385
        %vm1430 = vcmp.eq.s32.totalorder %v1414, %v1385
        %vm1431 = vcmp.eq.s32.totalorder %v1415, %v1385
        %vm1432 = vcmp.eq.s32.totalorder %v1416, %v1385
        %vm1433 = vcmp.eq.s32.totalorder %v1417, %v1385
        %v1434 = vlaneseq
        %v1435 = vshrl.u32 %v1434, 7
        %v1436 = vsub.s32 0, %v1435
        %v1437 = vrot.slane %v237, %v1436
        %vm1438 = vcmp.eq.s32.totalorder %v1402, %v1437
        %vm1439 = vcmp.eq.s32.totalorder %v1403, %v1437
        %vm1440 = vcmp.eq.s32.totalorder %v1404, %v1437
        %vm1441 = vcmp.eq.s32.totalorder %v1405, %v1437
        %vm1442 = vcmp.eq.s32.totalorder %v1406, %v1437
        %vm1443 = vcmp.eq.s32.totalorder %v1407, %v1437
        %vm1444 = vcmp.eq.s32.totalorder %v1408, %v1437
        %vm1445 = vcmp.eq.s32.totalorder %v1409, %v1437
        %vm1446 = vcmp.eq.s32.totalorder %v1410, %v1437
        %vm1447 = vcmp.eq.s32.totalorder %v1411, %v1437
        %vm1448 = vcmp.eq.s32.totalorder %v1412, %v1437
        %vm1449 = vcmp.eq.s32.totalorder %v1413, %v1437
        %vm1450 = vcmp.eq.s32.totalorder %v1414, %v1437
        %vm1451 = vcmp.eq.s32.totalorder %v1415, %v1437
        %vm1452 = vcmp.eq.s32.totalorder %v1416, %v1437
        %vm1453 = vcmp.eq.s32.totalorder %v1417, %v1437
        %vm1454 = vmand %vm1060, %vm1418
        %vm1455 = vmand %vm1061, %vm1419
        %vm1456 = vmand %vm1062, %vm1420
        %vm1457 = vmand %vm1063, %vm1421
        %vm1458 = vmand %vm1064, %vm1422
        %vm1459 = vmand %vm1065, %vm1423
        %vm1460 = vmand %vm1066, %vm1424
        %vm1461 = vmand %vm1067, %vm1425
        %vm1462 = vmand %vm1068, %vm1426
        %vm1463 = vmand %vm1069, %vm1427
        %vm1464 = vmand %vm1070, %vm1428
        %vm1465 = vmand %vm1071, %vm1429
        %vm1466 = vmand %vm1072, %vm1430
        %vm1467 = vmand %vm1073, %vm1431
        %vm1468 = vmand %vm1074, %vm1432
        %vm1469 = vmand %vm1075, %vm1433
        %vm1470 = vmand %vm1076, %vm1438
        %vm1471 = vmand %vm1077, %vm1439
        %vm1472 = vmand %vm1078, %vm1440
        %vm1473 = vmand %vm1079, %vm1441
        %vm1474 = vmand %vm1080, %vm1442
        %vm1475 = vmand %vm1081, %vm1443
        %vm1476 = vmand %vm1082, %vm1444
        %vm1477 = vmand %vm1083, %vm1445
        %vm1478 = vmand %vm1084, %vm1446
        %vm1479 = vmand %vm1085, %vm1447
        %vm1480 = vmand %vm1086, %vm1448
        %vm1481 = vmand %vm1087, %vm1449
        %vm1482 = vmand %vm1088, %vm1450
        %vm1483 = vmand %vm1089, %vm1451
        %vm1484 = vmand %vm1090, %vm1452
        %vm1485 = vmand %vm1091, %vm1453
        %s1486 = sadd.s32 %s174, 4294967293
        %s1487 = sadd.s32 %s176, 4294967293
        %v1488 = vstv %s1486
        %vm1489 = vcmp.lt.s32.totalorder %v182, %v1488
        %v1490 = vsel %vm1489, 1, 0
        %vm1491 = vcmp.eq.s32.totalorder %v1490, 1
        %vm1492 = vmand %vm1454, %vm1491
        %vm1493 = vmand %vm1455, %vm1491
        %vm1494 = vmand %vm1456, %vm1491
        %vm1495 = vmand %vm1457, %vm1491
        %vm1496 = vmand %vm1458, %vm1491
        %vm1497 = vmand %vm1459, %vm1491
        %vm1498 = vmand %vm1460, %vm1491
        %vm1499 = vmand %vm1461, %vm1491
        %vm1500 = vmand %vm1462, %vm1491
        %vm1501 = vmand %vm1463, %vm1491
        %vm1502 = vmand %vm1464, %vm1491
        %vm1503 = vmand %vm1465, %vm1491
        %vm1504 = vmand %vm1466, %vm1491
        %vm1505 = vmand %vm1467, %vm1491
        %vm1506 = vmand %vm1468, %vm1491
        %vm1507 = vmand %vm1469, %vm1491
        %v1508 = vsel %vm1492, 1.0, 0.0
        %v1509 = vsel %vm1493, 1.0, 0.0
        %v1510 = vsel %vm1494, 1.0, 0.0
        %v1511 = vsel %vm1495, 1.0, 0.0
        %v1512 = vsel %vm1496, 1.0, 0.0
        %v1513 = vsel %vm1497, 1.0, 0.0
        %v1514 = vsel %vm1498, 1.0, 0.0
        %v1515 = vsel %vm1499, 1.0, 0.0
        %v1516 = vsel %vm1500, 1.0, 0.0
        %v1517 = vsel %vm1501, 1.0, 0.0
        %v1518 = vsel %vm1502, 1.0, 0.0
        %v1519 = vsel %vm1503, 1.0, 0.0
        %v1520 = vsel %vm1504, 1.0, 0.0
        %v1521 = vsel %vm1505, 1.0, 0.0
        %v1522 = vsel %vm1506, 1.0, 0.0
        %v1523 = vsel %vm1507, 1.0, 0.0
        %v1524 = vstv %s1487
        %vm1525 = vcmp.lt.s32.totalorder %v182, %v1524
        %v1526 = vsel %vm1525, 1, 0
        %vm1527 = vcmp.eq.s32.totalorder %v1526, 1
        %vm1528 = vmand %vm1470, %vm1527
        %vm1529 = vmand %vm1471, %vm1527
        %vm1530 = vmand %vm1472, %vm1527
        %vm1531 = vmand %vm1473, %vm1527
        %vm1532 = vmand %vm1474, %vm1527
        %vm1533 = vmand %vm1475, %vm1527
        %vm1534 = vmand %vm1476, %vm1527
        %vm1535 = vmand %vm1477, %vm1527
        %vm1536 = vmand %vm1478, %vm1527
        %vm1537 = vmand %vm1479, %vm1527
        %vm1538 = vmand %vm1480, %vm1527
        %vm1539 = vmand %vm1481, %vm1527
        %vm1540 = vmand %vm1482, %vm1527
        %vm1541 = vmand %vm1483, %vm1527
        %vm1542 = vmand %vm1484, %vm1527
        %vm1543 = vmand %vm1485, %vm1527
        %v1544 = vsel %vm1528, 1.0, 0.0
        %v1545 = vsel %vm1529, 1.0, 0.0
        %v1546 = vsel %vm1530, 1.0, 0.0
        %v1547 = vsel %vm1531, 1.0, 0.0
        %v1548 = vsel %vm1532, 1.0, 0.0
        %v1549 = vsel %vm1533, 1.0, 0.0
        %v1550 = vsel %vm1534, 1.0, 0.0
        %v1551 = vsel %vm1535, 1.0, 0.0
        %v1552 = vsel %vm1536, 1.0, 0.0
        %v1553 = vsel %vm1537, 1.0, 0.0
        %v1554 = vsel %vm1538, 1.0, 0.0
        %v1555 = vsel %vm1539, 1.0, 0.0
        %v1556 = vsel %vm1540, 1.0, 0.0
        %v1557 = vsel %vm1541, 1.0, 0.0
        %v1558 = vsel %vm1542, 1.0, 0.0
        %v1559 = vsel %vm1543, 1.0, 0.0
        %1560 = vadd.xlane.f32.xlu0 %v1508
        %v1561 = vpop.xlane.xlu0 %1560
        %1562 = vadd.xlane.f32.xlu0 %v1509
        %v1563 = vpop.xlane.xlu0 %1562
        %1564 = vadd.xlane.f32.xlu0 %v1510
        %v1565 = vpop.xlane.xlu0 %1564
        %1566 = vadd.xlane.f32.xlu0 %v1511
        %v1567 = vpop.xlane.xlu0 %1566
        %1568 = vadd.xlane.f32.xlu0 %v1512
        %v1569 = vpop.xlane.xlu0 %1568
        %1570 = vadd.xlane.f32.xlu0 %v1513
        %v1571 = vpop.xlane.xlu0 %1570
        %1572 = vadd.xlane.f32.xlu0 %v1514
        %v1573 = vpop.xlane.xlu0 %1572
        %1574 = vadd.xlane.f32.xlu0 %v1515
        %v1575 = vpop.xlane.xlu0 %1574
        %1576 = vadd.xlane.f32.xlu0 %v1516
        %v1577 = vpop.xlane.xlu0 %1576
        %1578 = vadd.xlane.f32.xlu0 %v1517
        %v1579 = vpop.xlane.xlu0 %1578
        %1580 = vadd.xlane.f32.xlu0 %v1518
        %v1581 = vpop.xlane.xlu0 %1580
        %1582 = vadd.xlane.f32.xlu0 %v1519
        %v1583 = vpop.xlane.xlu0 %1582
        %1584 = vadd.xlane.f32.xlu0 %v1520
        %v1585 = vpop.xlane.xlu0 %1584
        %1586 = vadd.xlane.f32.xlu0 %v1521
        %v1587 = vpop.xlane.xlu0 %1586
        %1588 = vadd.xlane.f32.xlu0 %v1522
        %v1589 = vpop.xlane.xlu0 %1588
        %1590 = vadd.xlane.f32.xlu0 %v1523
        %v1591 = vpop.xlane.xlu0 %1590
        %1592 = vadd.xlane.f32.xlu0 %v1544
        %v1593 = vpop.xlane.xlu0 %1592
        %1594 = vadd.xlane.f32.xlu0 %v1545
        %v1595 = vpop.xlane.xlu0 %1594
        %1596 = vadd.xlane.f32.xlu0 %v1546
        %v1597 = vpop.xlane.xlu0 %1596
        %1598 = vadd.xlane.f32.xlu0 %v1547
        %v1599 = vpop.xlane.xlu0 %1598
        %1600 = vadd.xlane.f32.xlu0 %v1548
        %v1601 = vpop.xlane.xlu0 %1600
        %1602 = vadd.xlane.f32.xlu0 %v1549
        %v1603 = vpop.xlane.xlu0 %1602
        %1604 = vadd.xlane.f32.xlu0 %v1550
        %v1605 = vpop.xlane.xlu0 %1604
        %1606 = vadd.xlane.f32.xlu0 %v1551
        %v1607 = vpop.xlane.xlu0 %1606
        %1608 = vadd.xlane.f32.xlu0 %v1552
        %v1609 = vpop.xlane.xlu0 %1608
        %1610 = vadd.xlane.f32.xlu0 %v1553
        %v1611 = vpop.xlane.xlu0 %1610
        %1612 = vadd.xlane.f32.xlu0 %v1554
        %v1613 = vpop.xlane.xlu0 %1612
        %1614 = vadd.xlane.f32.xlu0 %v1555
        %v1615 = vpop.xlane.xlu0 %1614
        %1616 = vadd.xlane.f32.xlu0 %v1556
        %v1617 = vpop.xlane.xlu0 %1616
        %1618 = vadd.xlane.f32.xlu0 %v1557
        %v1619 = vpop.xlane.xlu0 %1618
        %1620 = vadd.xlane.f32.xlu0 %v1558
        %v1621 = vpop.xlane.xlu0 %1620
        %1622 = vadd.xlane.f32.xlu0 %v1559
        %v1623 = vpop.xlane.xlu0 %1622
        %v1624 = vmin.f32 %v1561, %v1593
        %v1625 = vmin.f32 %v1563, %v1595
        %v1626 = vmin.f32 %v1565, %v1597
        %v1627 = vmin.f32 %v1567, %v1599
        %v1628 = vmin.f32 %v1569, %v1601
        %v1629 = vmin.f32 %v1571, %v1603
        %v1630 = vmin.f32 %v1573, %v1605
        %v1631 = vmin.f32 %v1575, %v1607
        %v1632 = vmin.f32 %v1577, %v1609
        %v1633 = vmin.f32 %v1579, %v1611
        %v1634 = vmin.f32 %v1581, %v1613
        %v1635 = vmin.f32 %v1583, %v1615
        %v1636 = vmin.f32 %v1585, %v1617
        %v1637 = vmin.f32 %v1587, %v1619
        %v1638 = vmin.f32 %v1589, %v1621
        %v1639 = vmin.f32 %v1591, %v1623
        %v1640 = vmax.f32 %v1561, 1.0
        %v1641 = vmax.f32 %v1563, 1.0
        %v1642 = vmax.f32 %v1565, 1.0
        %v1643 = vmax.f32 %v1567, 1.0
        %v1644 = vmax.f32 %v1569, 1.0
        %v1645 = vmax.f32 %v1571, 1.0
        %v1646 = vmax.f32 %v1573, 1.0
        %v1647 = vmax.f32 %v1575, 1.0
        %v1648 = vmax.f32 %v1577, 1.0
        %v1649 = vmax.f32 %v1579, 1.0
        %v1650 = vmax.f32 %v1581, 1.0
        %v1651 = vmax.f32 %v1583, 1.0
        %v1652 = vmax.f32 %v1585, 1.0
        %v1653 = vmax.f32 %v1587, 1.0
        %v1654 = vmax.f32 %v1589, 1.0
        %v1655 = vmax.f32 %v1591, 1.0
        %v1656 = vrcp.pop %v1640
        %v1657 = vmul.f32 %v1624, %v1656
        %v1658 = vrcp.pop %v1641
        %v1659 = vmul.f32 %v1625, %v1658
        %v1660 = vrcp.pop %v1642
        %v1661 = vmul.f32 %v1626, %v1660
        %v1662 = vrcp.pop %v1643
        %v1663 = vmul.f32 %v1627, %v1662
        %v1664 = vrcp.pop %v1644
        %v1665 = vmul.f32 %v1628, %v1664
        %v1666 = vrcp.pop %v1645
        %v1667 = vmul.f32 %v1629, %v1666
        %v1668 = vrcp.pop %v1646
        %v1669 = vmul.f32 %v1630, %v1668
        %v1670 = vrcp.pop %v1647
        %v1671 = vmul.f32 %v1631, %v1670
        %v1672 = vrcp.pop %v1648
        %v1673 = vmul.f32 %v1632, %v1672
        %v1674 = vrcp.pop %v1649
        %v1675 = vmul.f32 %v1633, %v1674
        %v1676 = vrcp.pop %v1650
        %v1677 = vmul.f32 %v1634, %v1676
        %v1678 = vrcp.pop %v1651
        %v1679 = vmul.f32 %v1635, %v1678
        %v1680 = vrcp.pop %v1652
        %v1681 = vmul.f32 %v1636, %v1680
        %v1682 = vrcp.pop %v1653
        %v1683 = vmul.f32 %v1637, %v1682
        %v1684 = vrcp.pop %v1654
        %v1685 = vmul.f32 %v1638, %v1684
        %v1686 = vrcp.pop %v1655
        %v1687 = vmul.f32 %v1639, %v1686
        %vm1688 = vcmp.lt.s32.totalorder %v184, %v1488
        %vm1689 = vcmp.lt.s32.totalorder %v185, %v1488
        %vm1690 = vcmp.lt.s32.totalorder %v186, %v1488
        %vm1691 = vcmp.lt.s32.totalorder %v187, %v1488
        %vm1692 = vcmp.lt.s32.totalorder %v188, %v1488
        %vm1693 = vcmp.lt.s32.totalorder %v189, %v1488
        %vm1694 = vcmp.lt.s32.totalorder %v190, %v1488
        %vm1695 = vcmp.lt.s32.totalorder %v191, %v1488
        %vm1696 = vcmp.lt.s32.totalorder %v192, %v1488
        %vm1697 = vcmp.lt.s32.totalorder %v193, %v1488
        %vm1698 = vcmp.lt.s32.totalorder %v194, %v1488
        %vm1699 = vcmp.lt.s32.totalorder %v195, %v1488
        %vm1700 = vcmp.lt.s32.totalorder %v196, %v1488
        %vm1701 = vcmp.lt.s32.totalorder %v197, %v1488
        %vm1702 = vcmp.lt.s32.totalorder %v198, %v1488
        %vm1703 = vcmp.lt.s32.totalorder %v199, %v1488
        %v1704 = vsel %vm1688, %v1657, 0.0
        %v1705 = vsel %vm1689, %v1659, 0.0
        %v1706 = vsel %vm1690, %v1661, 0.0
        %v1707 = vsel %vm1691, %v1663, 0.0
        %v1708 = vsel %vm1692, %v1665, 0.0
        %v1709 = vsel %vm1693, %v1667, 0.0
        %v1710 = vsel %vm1694, %v1669, 0.0
        %v1711 = vsel %vm1695, %v1671, 0.0
        %v1712 = vsel %vm1696, %v1673, 0.0
        %v1713 = vsel %vm1697, %v1675, 0.0
        %v1714 = vsel %vm1698, %v1677, 0.0
        %v1715 = vsel %vm1699, %v1679, 0.0
        %v1716 = vsel %vm1700, %v1681, 0.0
        %v1717 = vsel %vm1701, %v1683, 0.0
        %v1718 = vsel %vm1702, %v1685, 0.0
        %v1719 = vsel %vm1703, %v1687, 0.0
        %v1720 = vsel %vm538, %v1704, 0.0
        %v1721 = vsel %vm538, %v1705, 0.0
        %v1722 = vadd.f32 %v1720, %v1721
        %v1723 = vsel %vm538, %v1706, 0.0
        %v1724 = vadd.f32 %v1722, %v1723
        %v1725 = vsel %vm538, %v1707, 0.0
        %v1726 = vadd.f32 %v1724, %v1725
        %v1727 = vsel %vm538, %v1708, 0.0
        %v1728 = vadd.f32 %v1726, %v1727
        %v1729 = vsel %vm538, %v1709, 0.0
        %v1730 = vadd.f32 %v1728, %v1729
        %v1731 = vsel %vm538, %v1710, 0.0
        %v1732 = vadd.f32 %v1730, %v1731
        %v1733 = vsel %vm538, %v1711, 0.0
        %v1734 = vadd.f32 %v1732, %v1733
        %v1735 = vsel %vm538, %v1712, 0.0
        %v1736 = vadd.f32 %v1734, %v1735
        %v1737 = vsel %vm538, %v1713, 0.0
        %v1738 = vadd.f32 %v1736, %v1737
        %v1739 = vsel %vm538, %v1714, 0.0
        %v1740 = vadd.f32 %v1738, %v1739
        %v1741 = vsel %vm538, %v1715, 0.0
        %v1742 = vadd.f32 %v1740, %v1741
        %v1743 = vsel %vm538, %v1716, 0.0
        %v1744 = vadd.f32 %v1742, %v1743
        %v1745 = vsel %vm538, %v1717, 0.0
        %v1746 = vadd.f32 %v1744, %v1745
        %v1747 = vsel %vm538, %v1718, 0.0
        %v1748 = vadd.f32 %v1746, %v1747
        %v1749 = vsel %vm538, %v1719, 0.0
        %v1750 = vadd.f32 %v1748, %v1749
        %1751 = vadd.xlane.f32.xlu0 %v1750
        %v1752 = vpop.xlane.xlu0 %1751
        %v1753 = vrot.slane %v1752, 4
        %v1754 = vadd.f32 %v1752, %v1753
        %v1755 = vrot.slane %v1754, 2
        %v1756 = vadd.f32 %v1754, %v1755
        %v1757 = vrot.slane %v1756, 1
        %v1758 = vadd.f32 %v1756, %v1757
        %s1759 = vtos %v1758
        %v1760 = vstv %s1759
        %vm1761 = vcmp.gt.s32.totalorder %v1488, 0
        %v1762 = vsel %vm1761, %v1488, 0
        %v1763 = vcvt.s32.f32 %v1762
        %vm1764 = vcmp.gt.f32.partialorder %v1760, 0.0
        %vm1765 = vcmp.gt.s32.totalorder %v1488, 0
        %vm1766 = vmand %vm1764, %vm1765
        %v1767 = vmax.f32 %v1763, 1.0
        %v1768 = vrcp.pop %v1767
        %v1769 = vmul.f32 %v1760, %v1768
        %v1770 = vsel %vm1766, %v1769, 1.0
        %v1771 = vlog2.pop %v1770
        %v1772 = vmul.f32 %v1771, 0.6931472
        %v1773 = vadd.f32 %v1379, %v1772
        %v1774 = vsel %vm1766, 1.0, 0.0
        %v1775 = vmul.f32 %v1381, %v1774
        %vm1776 = vcmp.gt.f32.partialorder %v203, %v201
        %v1777 = vmul.f32 %v201, %v223
        %v1778 = vsub.f32 1.0, %v1777
        %v1779 = vmul.f32 %v1778, 1.442695
        %v1780 = vpow.pop %v1779
        %v1781 = vsel %vm1776, 1.0, %v1780
        %vm1782 = vcmp.gt.f32.partialorder %v1775, 0.0
        %v1783 = vrcp.pop 4.0
        %v1784 = vmul.f32 %v1773, %v1783
        %v1785 = vmul.f32 %v1784, 1.442695
        %v1786 = vpow.pop %v1785
        %v1787 = vmul.f32 %v1781, %v1786
        %v1788 = vsel %vm1782, %v1787, 0.0
        %v1789 = vmul.f32 %v1788, 100.0
        %vm1790 = vcmp.eq.s32.totalorder %v182, 0
        %vm1791 = vcmp.eq.s32.totalorder %v182, 1
        %v1792 = vsel %vm1791, %v1789, 0.0
        %v1793 = vsel %vm1790, %v225, %v1792
        %1794 = vst [vmem:[%s172] sm:$0x1] %v1793
        %p1795 = scmp.lt.s32.totalorder %s21, 3
        %s1796 = scalar_select %p1795, %s21, 3
        %s1797 = scalar_lea.vmem %s3, %s1796
        // Predicated region
        $region33: #{_evaluator_batch.1} parent=27 // pred_check
          %p1798 = pneg %p91
        $region34: #{_evaluator_batch.1} parent=27 // pred_check_branch
          %1800 = sbr.rel (%p1798) target = $region36
        $region35: #{_evaluator_batch.1} parent=27 // pred_region
          _
        $region36: #{_evaluator_batch.1} parent=27 // pred_fallthru
          _
      $region28: #{_evaluator_batch.1} parent=5 // pred_fallthru
        _
      %p1801 = scmp.le.s32.totalorder 2, %s16
      // Predicated region
      $region37: #{_evaluator_batch.1} parent=5 // pred_check
        %p1802 = pneg %p1801
      $region38: #{_evaluator_batch.1} parent=5 // pred_check_branch
        %1804 = sbr.rel (%p1802) target = $region40
      $region39: #{_evaluator_batch.1} parent=5 // pred_region
        %s1805 = ssub.s32 %s16, 2
        // Predicated region
        $region41: #{_evaluator_batch.1} parent=39 // pred_check
          %p1806 = pneg %p97
        $region42: #{_evaluator_batch.1} parent=39 // pred_check_branch
          %1808 = sbr.rel (%p1806) target = $region44
        $region43: #{_evaluator_batch.1} parent=39 // pred_region
          %p1809 = scmp.lt.s32.totalorder %s22, 3
          %s1810 = scalar_select %p1809, %s22, 3
          %s1811 = scalar_lea.vmem %s3, %s1810
        $region44: #{_evaluator_batch.1} parent=39 // pred_fallthru
          _
      $region40: #{_evaluator_batch.1} parent=5 // pred_fallthru
        _
    $region6: #{_evaluator_batch.1} parent=1 // loop_footer
      %s20 = sadd.s32 1, %s16
    $region7: #{_evaluator_batch.1} parent=1 // loop_footer_branch
      %15 = sbr.rel target = $region3
    $region8: #{_evaluator_batch.1} parent=1 // loop_exit
      _
    %1812 = vsyncpa [#allocation5], 1
    %s1813 = scalar_lea.sflag [#allocation5], 1
    %1814 = vsyncpa %s1813, 1

</llo_original>
